<compile_context>
chip_gen: v6e
topology: v6e:2x2x1
jax: 0.10.0
libtpu: 0.0.40
codegen_flags: <defaults>
</compile_context>

<pallas_src>
import math
import functools
import numpy as np
import jax
import jax.numpy as jnp
from jax import lax
from jax.experimental import pallas as pl
from jax.experimental.pallas import tpu as pltpu


# 48 MiB: raises v5e/v6e's default scoped limit so 512-wide tiles double-buffer
# comfortably, while staying safely under v7x's 64 MiB physical VMEM per core.
_VMEM_LIMIT_BYTES = 48 * 1024 * 1024
_MASK_VALUE = -1e30   # large finite negative (avoids -inf arithmetic in masked scores)


def _sublane_align(dtype) -> int:
    """Sublane (second-to-last block dim) alignment: 8 f32, 16 bf16, 32 int8/fp8."""
    return {4: 8, 2: 16, 1: 32}[jnp.dtype(dtype).itemsize]


def _pick_tile(dim: int, preferred: int, align: int) -> int:
    """Largest tile <= preferred that divides dim and is a multiple of align,
    falling back to the full dim (always a legal Mosaic block)."""
    if dim <= preferred:
        return dim
    t = (preferred // align) * align
    while t >= align:
        if dim % t == 0:
            return t
        t -= align
    return dim


# ----------------------------- tiled linear (y = x @ W + b) -----------------------------

def _linear_kernel(x_ref, w_ref, b_ref, o_ref, acc_ref):
    kk = pl.program_id(2)

    @pl.when(kk == 0)
    def _():
        acc_ref[...] = jnp.zeros_like(acc_ref)

    acc_ref[...] += jnp.dot(x_ref[...], w_ref[...],
                            preferred_element_type=jnp.float32)

    @pl.when(kk == pl.num_programs(2) - 1)
    def _():
        o_ref[...] = (acc_ref[...] + b_ref[...].astype(jnp.float32)).astype(o_ref.dtype)


def pallas_linear(x, w, b, *, tm=512, tn=512, tk=512):
    """x: (M, K), w: (K, N), b: (N,) -> (M, N); K-tiled with f32 accumulation."""
    M, K = x.shape
    Kw, N = w.shape
    assert K == Kw and b.shape == (N,)
    tm = _pick_tile(M, tm, _sublane_align(x.dtype))   # sublane dim of x / out
    tn = _pick_tile(N, tn, 128)                       # lane dim of w / out
    tk = _pick_tile(K, tk, 128)                       # lane of x, sublane of w
    grid = (M // tm, N // tn, K // tk)

    return pl.pallas_call(
        _linear_kernel,
        out_shape=jax.ShapeDtypeStruct((M, N), x.dtype),
        grid_spec=pltpu.PrefetchScalarGridSpec(
            num_scalar_prefetch=0,
            grid=grid,
            in_specs=[
                pl.BlockSpec((tm, tk), lambda i, j, k: (i, k)),
                pl.BlockSpec((tk, tn), lambda i, j, k: (k, j)),
                pl.BlockSpec((1, tn), lambda i, j, k: (0, j)),
            ],
            out_specs=pl.BlockSpec((tm, tn), lambda i, j, k: (i, j)),
            scratch_shapes=[pltpu.VMEM((tm, tn), jnp.float32)],
        ),
        compiler_params=pltpu.CompilerParams(
            dimension_semantics=("parallel", "parallel", "arbitrary"),
            vmem_limit_bytes=_VMEM_LIMIT_BYTES,
        ),
    )(x, w, b.reshape(1, N))


# ----------------------------- flash causal attention -----------------------------

def _flash_attn_kernel(q_ref, k_ref, v_ref, o_ref, q_sc, m_sc, l_sc, acc_sc,
                       *, sm_scale, exp_dtype):
    qi = pl.program_id(1)
    ki = pl.program_id(2)

    @pl.when(ki == 0)
    def _():
        # Scale q once per q tile (not once per KV step): the VPU is the busy unit.
        q_sc[...] = q_ref[...] * sm_scale
        m_sc[...] = jnp.full_like(m_sc, -jnp.inf)
        l_sc[...] = jnp.zeros_like(l_sc)
        acc_sc[...] = jnp.zeros_like(acc_sc)

    def tile_update(masked):
        k = k_ref[...]
        v = v_ref[...]
        # QK^T without materializing k.T: contract the last dim of both operands.
        s = lax.dot_general(q_sc[...], k, (((1,), (1,)), ((), ())),
                            preferred_element_type=jnp.float32)        # (t, t) f32
        if masked:
            # Diagonal tile only (qi == ki), so global row/col offsets cancel.
            row = lax.broadcasted_iota(jnp.int32, s.shape, 0)
            col = lax.broadcasted_iota(jnp.int32, s.shape, 1)
            s = jnp.where(col <= row, s, _MASK_VALUE)
        m_prev = m_sc[...]
        m_new = jnp.maximum(m_prev, jnp.max(s, axis=-1, keepdims=True))
        # exp in bf16 for bf16 models (bf16 EUP on v6e/v7x); m/l/acc stay f32.
        alpha = jnp.exp((m_prev - m_new).astype(exp_dtype))
        p = jnp.exp((s - m_new).astype(exp_dtype))
        l_sc[...] = alpha * l_sc[...] + jnp.sum(p.astype(jnp.float32),
                                                axis=-1, keepdims=True)
        acc_sc[...] = alpha * acc_sc[...] + jnp.dot(
            p.astype(v.dtype), v, preferred_element_type=jnp.float32)
        m_sc[...] = m_new

    # Fully-visible KV tiles (strictly below the diagonal): no mask work at all.
    @pl.when(ki < qi)
    def _():
        tile_update(masked=False)

    # Diagonal tile: apply the causal mask, then finalize. Steps with ki > qi
    # are complete no-ops (their KV index_map is clamped, so no DMA either).
    @pl.when(ki == qi)
    def _():
        tile_update(masked=True)
        inv_l = pl.reciprocal(l_sc[...], approx=True)   # EUP slot, essentially free
        o_ref[...] = (acc_sc[...] * inv_l).astype(o_ref.dtype)


def pallas_causal_attention(qkv, *, tile=512):
    """qkv: (3, B*nh, T, D) packed q/k/v -> (B*nh, T, D) causal attention."""
    three, BH, T, D = qkv.shape
    assert three == 3
    t = _pick_tile(T, tile, _sublane_align(qkv.dtype))   # same tile for q and kv
    sm_scale = 1.0 / math.sqrt(D)
    exp_dtype = jnp.bfloat16 if qkv.dtype == jnp.bfloat16 else jnp.float32
    grid = (BH, T // t, T // t)

    # KV index clamped to the diagonal block: grid steps above the causal
    # diagonal re-point at the already-resident block and issue no new DMA.
    qkv_blk = (None, None, t, D)
    q_spec = pl.BlockSpec(qkv_blk, lambda b, i, j: (0, b, i, 0))
    k_spec = pl.BlockSpec(qkv_blk, lambda b, i, j: (1, b, jnp.minimum(j, i), 0))
    v_spec = pl.BlockSpec(qkv_blk, lambda b, i, j: (2, b, jnp.minimum(j, i), 0))
    o_spec = pl.BlockSpec((None, t, D), lambda b, i, j: (b, i, 0))

    return pl.pallas_call(
        functools.partial(_flash_attn_kernel, sm_scale=sm_scale, exp_dtype=exp_dtype),
        out_shape=jax.ShapeDtypeStruct((BH, T, D), qkv.dtype),
        grid_spec=pltpu.PrefetchScalarGridSpec(
            num_scalar_prefetch=0,
            grid=grid,
            in_specs=[q_spec, k_spec, v_spec],
            out_specs=o_spec,
            scratch_shapes=[
                pltpu.VMEM((t, D), qkv.dtype),     # scaled q tile
                pltpu.VMEM((t, 1), jnp.float32),   # running max m
                pltpu.VMEM((t, 1), jnp.float32),   # running denom l
                pltpu.VMEM((t, D), jnp.float32),   # output accumulator
            ],
        ),
        compiler_params=pltpu.CompilerParams(
            dimension_semantics=("parallel", "parallel", "arbitrary"),
            vmem_limit_bytes=_VMEM_LIMIT_BYTES,
        ),
    )(qkv, qkv, qkv)   # same array, three specs (q/k/v select axis-0 index)


# ----------------------------- c_proj with fused head merge -----------------------------

def _head_merge_proj_kernel(o_ref, w_ref, b_ref, y_ref, acc_ref):
    h = pl.program_id(3)

    @pl.when(h == 0)
    def _():
        acc_ref[...] = jnp.zeros_like(acc_ref)

    acc_ref[...] += jnp.dot(o_ref[...], w_ref[...],
                            preferred_element_type=jnp.float32)

    @pl.when(h == pl.num_programs(3) - 1)
    def _():
        y_ref[...] = (acc_ref[...] + b_ref[...].astype(jnp.float32)).astype(y_ref.dtype)


def pallas_head_merge_proj(o, w, b, *, tm=512, tn=512):
    """o: (B, nh, T, D), w: (nh, D, C), b: (C,) -> (B, T, C).

    Head merge fused into c_proj as a K-reduction over heads, so the
    (B,nh,T,D)->(B,T,nh*D) transpose never round-trips HBM.
    """
    B, nh, T, D = o.shape
    nh_w, Dw, C = w.shape
    assert (nh_w, Dw) == (nh, D) and b.shape == (C,)
    tm = _pick_tile(T, tm, _sublane_align(o.dtype))
    tn = _pick_tile(C, tn, 128)
    grid = (B, T // tm, C // tn, nh)

    return pl.pallas_call(
        _head_merge_proj_kernel,
        out_shape=jax.ShapeDtypeStruct((B, T, C), o.dtype),
        grid_spec=pltpu.PrefetchScalarGridSpec(
            num_scalar_prefetch=0,
            grid=grid,
            in_specs=[
                pl.BlockSpec((None, None, tm, D), lambda b, i, j, h: (b, h, i, 0)),
                pl.BlockSpec((None, D, tn), lambda b, i, j, h: (h, 0, j)),
                pl.BlockSpec((1, tn), lambda b, i, j, h: (0, j)),
            ],
            out_specs=pl.BlockSpec((None, tm, tn), lambda b, i, j, h: (b, i, j)),
            scratch_shapes=[pltpu.VMEM((tm, tn), jnp.float32)],
        ),
        compiler_params=pltpu.CompilerParams(
            dimension_semantics=("parallel", "parallel", "parallel", "arbitrary"),
            vmem_limit_bytes=_VMEM_LIMIT_BYTES,
        ),
    )(o, w, b.reshape(1, C))


# ----------------------------- forward pass -----------------------------

def causal_self_attention(x, w_attn, b_attn, w_proj, b_proj, *, n_head, attn_tile=512):
    """Matches CausalSelfAttention.forward (weights stored (in_features, out_features))."""
    B, T, C = x.shape
    assert C % n_head == 0
    D = C // n_head

    # c_attn: fused qkv projection (tiled Pallas matmul).
    qkv = pallas_linear(x.reshape(B * T, C), w_attn, b_attn)        # (B*T, 3C)

    # Head split: one fused XLA transpose to (3, B*nh, T, D); c_attn column
    # order is already (qkv, head, D) so this is the only data movement.
    # TODO(synk): fuse this transpose into the c_attn output BlockSpec (write
    # D-wide column groups straight to a heads-major layout) to save one HBM
    # round trip of the activations.
    qkv = qkv.reshape(B, T, 3, n_head, D).transpose(2, 0, 3, 1, 4)
    qkv = qkv.reshape(3, B * n_head, T, D)

    o = pallas_causal_attention(qkv, tile=attn_tile)                # (B*nh, T, D)

    # c_proj with the head merge fused in (reduction over the head axis).
    y = pallas_head_merge_proj(o.reshape(B, n_head, T, D),
                               w_proj.reshape(n_head, D, C), b_proj)
    return y                                                        # (B, T, C)


# ----------------------------- pure-JAX reference -----------------------------

def _reference(x, w_attn, b_attn, w_proj, b_proj, n_head):
    B, T, C = x.shape
    D = C // n_head
    qkv = x.reshape(B * T, C) @ w_attn + b_attn
    qkv = qkv.reshape(B, T, 3 * C)
    q = qkv[..., :C].reshape(B, T, n_head, D).transpose(0, 2, 1, 3)
    k = qkv[..., C:2 * C].reshape(B, T, n_head, D).transpose(0, 2, 1, 3)
    v = qkv[..., 2 * C:].reshape(B, T, n_head, D).transpose(0, 2, 1, 3)
    s = jnp.einsum("bhqd,bhkd->bhqk", q, k) / math.sqrt(D)
    mask = jnp.tril(jnp.ones((T, T), dtype=bool))
    s = jnp.where(mask, s, -jnp.inf)
    p = jax.nn.softmax(s, axis=-1)
    o = jnp.einsum("bhqk,bhkd->bhqd", p, v)
    o = o.transpose(0, 2, 1, 3).reshape(B * T, C)
    y = o @ w_proj + b_proj
    return y.reshape(B, T, C)


# ----------------------------- main -----------------------------

def _run_case(B, T, n_head, n_embd, dtype, attn_tile, atol, rtol):
    n_layer = 12
    key = jax.random.PRNGKey(0)
    k_x, k_wa, k_wp = jax.random.split(key, 3)

    std_attn = 0.02
    std_proj = 0.02 * (2 * n_layer) ** (-0.5)

    # Weights stored (in_features, out_features); biases zero (as in _init_weight).
    w_attn = std_attn * jax.random.normal(k_wa, (n_embd, 3 * n_embd), jnp.float32)
    b_attn = jnp.zeros((3 * n_embd,), jnp.float32)
    w_proj = std_proj * jax.random.normal(k_wp, (n_embd, n_embd), jnp.float32)
    b_proj = jnp.zeros((n_embd,), jnp.float32)
    x = jax.random.normal(k_x, (B, T, n_embd), jnp.float32)

    fwd = jax.jit(functools.partial(causal_self_attention, n_head=n_head,
                                    attn_tile=attn_tile))
    args = [a.astype(dtype) for a in (x, w_attn, b_attn, w_proj, b_proj)]
    y = jax.block_until_ready(fwd(*args))

    y_ref = _reference(x, w_attn, b_attn, w_proj, b_proj, n_head)
    np.testing.assert_allclose(np.asarray(y.astype(jnp.float32)),
                               np.asarray(y_ref), atol=atol, rtol=rtol)


if __name__ == "__main__":
    # Small GPT config consistent with the module (n_embd % n_head == 0), f32.
    _run_case(B=2, T=8, n_head=4, n_embd=32, dtype=jnp.float32,
              attn_tile=512, atol=1e-4, rtol=5e-3)
    # Multi-tile config: exercises below-diagonal (unmasked), diagonal (masked)
    # and skipped (clamped-DMA, no-op) KV tiles plus K-tiled linears, f32.
    _run_case(B=1, T=256, n_head=4, n_embd=256, dtype=jnp.float32,
              attn_tile=64, atol=1e-3, rtol=2e-2)
    # bf16 end-to-end (bf16 MXU operands + bf16 softmax exponentials); loose
    # tolerance accounts for bf16 rounding of inputs/activations.
    _run_case(B=2, T=8, n_head=4, n_embd=32, dtype=jnp.bfloat16,
              attn_tile=512, atol=5e-3, rtol=5e-2)

    print("KERNEL_OK")
</pallas_src>

<mosaic_0001>
module attributes {stable_mosaic.version = 11 : i64} {
  func.func @_linear_kernel(%arg0: i32, %arg1: i32, %arg2: i32, %arg3: memref<16x32xf32, #tpu.memory_space<vmem>>, %arg4: memref<32x96xf32, #tpu.memory_space<vmem>>, %arg5: memref<1x96xf32, #tpu.memory_space<vmem>>, %arg6: memref<16x96xf32, #tpu.memory_space<vmem>>, %arg7: memref<16x96xf32, #tpu.memory_space<vmem>>) attributes {dimension_semantics = [#tpu.dimension_semantics<parallel>, #tpu.dimension_semantics<parallel>, #tpu.dimension_semantics<arbitrary>], iteration_bounds = array<i64: 1, 1, 1>, scalar_prefetch = 0 : i64, scratch_operands = 1 : i64, tpu.core_type = #tpu.core_type<tc>, window_params = [{transform_indices = @transform_0, window_bounds = array<i64: 16, 32>}, {transform_indices = @transform_1, window_bounds = array<i64: 32, 96>}, {transform_indices = @transform_2, window_bounds = array<i64: 1, 96>}, {transform_indices = @transform_3, window_bounds = array<i64: 16, 96>}]} {
    %c0_i32 = arith.constant 0 : i32
    %0 = arith.cmpi eq, %arg2, %c0_i32 : i32
    %1 = arith.extui %0 : i1 to i32
    %c0_i32_0 = arith.constant 0 : i32
    %2 = arith.cmpi ne, %1, %c0_i32_0 : i32
    scf.if %2 {
      %cst_10 = arith.constant 0.000000e+00 : f32
      %12 = vector.broadcast %cst_10 : f32 to vector<16x96xf32>
      %c0_11 = arith.constant 0 : index
      %c0_12 = arith.constant 0 : index
      %13 = vector.load %arg7[%c0_11, %c0_12] : memref<16x96xf32, #tpu.memory_space<vmem>>, vector<16x96xf32>
      tpu.vector_store %arg7[%c0_11, %c0_12], %12 {strides = array<i32>} : memref<16x96xf32, #tpu.memory_space<vmem>>, vector<16x96xf32>,
    } else {
    }
    %c0 = arith.constant 0 : index
    %c0_1 = arith.constant 0 : index
    %3 = vector.load %arg7[%c0, %c0_1] : memref<16x96xf32, #tpu.memory_space<vmem>>, vector<16x96xf32>
    %c0_2 = arith.constant 0 : index
    %c0_3 = arith.constant 0 : index
    %4 = vector.load %arg3[%c0_2, %c0_3] : memref<16x32xf32, #tpu.memory_space<vmem>>, vector<16x32xf32>
    %c0_4 = arith.constant 0 : index
    %c0_5 = arith.constant 0 : index
    %5 = vector.load %arg4[%c0_4, %c0_5] : memref<32x96xf32, #tpu.memory_space<vmem>>, vector<32x96xf32>
    %cst = arith.constant dense<0.000000e+00> : vector<16x96xf32>
    %6 = tpu.matmul %4, %5, %cst {dimension_numbers = #tpu.dot_dimension_numbers<[1], [0], [0], [1], [0, 0, 1, 1], [], []>} : vector<16x32xf32>, vector<32x96xf32>, vector<16x96xf32> -> vector<16x96xf32>
    %7 = arith.addf %3, %6 : vector<16x96xf32>
    %c0_6 = arith.constant 0 : index
    %c0_7 = arith.constant 0 : index
    %8 = vector.load %arg7[%c0_6, %c0_7] : memref<16x96xf32, #tpu.memory_space<vmem>>, vector<16x96xf32>
    tpu.vector_store %arg7[%c0_6, %c0_7], %7 {strides = array<i32>} : memref<16x96xf32, #tpu.memory_space<vmem>>, vector<16x96xf32>,
    %c0_i32_8 = arith.constant 0 : i32
    %9 = arith.cmpi eq, %arg2, %c0_i32_8 : i32
    %10 = arith.extui %9 : i1 to i32
    %c0_i32_9 = arith.constant 0 : i32
    %11 = arith.cmpi ne, %10, %c0_i32_9 : i32
    scf.if %11 {
      %c0_10 = arith.constant 0 : index
      %c0_11 = arith.constant 0 : index
      %12 = vector.load %arg7[%c0_10, %c0_11] : memref<16x96xf32, #tpu.memory_space<vmem>>, vector<16x96xf32>
      %c0_12 = arith.constant 0 : index
      %c0_13 = arith.constant 0 : index
      %13 = vector.load %arg5[%c0_12, %c0_13] : memref<1x96xf32, #tpu.memory_space<vmem>>, vector<1x96xf32>
      %14 = vector.broadcast %13 : vector<1x96xf32> to vector<16x96xf32>
      %15 = arith.addf %12, %14 : vector<16x96xf32>
      %c0_14 = arith.constant 0 : index
      %c0_15 = arith.constant 0 : index
      %16 = vector.load %arg6[%c0_14, %c0_15] : memref<16x96xf32, #tpu.memory_space<vmem>>, vector<16x96xf32>
      tpu.vector_store %arg6[%c0_14, %c0_15], %15 {strides = array<i32>} : memref<16x96xf32, #tpu.memory_space<vmem>>, vector<16x96xf32>,
    } else {
    }
    return
  }
  func.func @transform_0(%arg0: i32, %arg1: i32, %arg2: i32) -> (i32, i32) {
    %c0_i32 = arith.constant 0 : i32
    return %arg0, %arg2 : i32, i32
  }
  func.func @transform_1(%arg0: i32, %arg1: i32, %arg2: i32) -> (i32, i32) {
    %c0_i32 = arith.constant 0 : i32
    return %arg2, %arg1 : i32, i32
  }
  func.func @transform_2(%arg0: i32, %arg1: i32, %arg2: i32) -> (i32, i32) {
    %c0_i32 = arith.constant 0 : i32
    %c0_i32_0 = arith.constant 0 : i32
    return %c0_i32, %arg1 : i32, i32
  }
  func.func @transform_3(%arg0: i32, %arg1: i32, %arg2: i32) -> (i32, i32) {
    %c0_i32 = arith.constant 0 : i32
    return %arg0, %arg1 : i32, i32
  }
}

module attributes {stable_mosaic.version = 11 : i64} {
  func.func @_flash_attn_kernel(%arg0: i32, %arg1: i32, %arg2: i32, %arg3: memref<1x1x8x8xf32, #tpu.memory_space<vmem>>, %arg4: memref<1x1x8x8xf32, #tpu.memory_space<vmem>>, %arg5: memref<1x1x8x8xf32, #tpu.memory_space<vmem>>, %arg6: memref<1x8x8xf32, #tpu.memory_space<vmem>>, %arg7: memref<8x8xf32, #tpu.memory_space<vmem>>, %arg8: memref<8x1xf32, #tpu.memory_space<vmem>>, %arg9: memref<8x1xf32, #tpu.memory_space<vmem>>, %arg10: memref<8x8xf32, #tpu.memory_space<vmem>>) attributes {dimension_semantics = [#tpu.dimension_semantics<parallel>, #tpu.dimension_semantics<parallel>, #tpu.dimension_semantics<arbitrary>], iteration_bounds = array<i64: 8, 1, 1>, scalar_prefetch = 0 : i64, scratch_operands = 4 : i64, tpu.core_type = #tpu.core_type<tc>, window_params = [{transform_indices = @transform_0, window_bounds = array<i64: 1, 1, 8, 8>}, {transform_indices = @transform_1, window_bounds = array<i64: 1, 1, 8, 8>}, {transform_indices = @transform_2, window_bounds = array<i64: 1, 1, 8, 8>}, {transform_indices = @transform_3, window_bounds = array<i64: 1, 8, 8>}]} {
    %c0_i32 = arith.constant 0 : i32
    %0 = arith.cmpi eq, %arg2, %c0_i32 : i32
    %1 = arith.extui %0 : i1 to i32
    %c0_i32_0 = arith.constant 0 : i32
    %2 = arith.cmpi ne, %1, %c0_i32_0 : i32
    scf.if %2 {
      %c0 = arith.constant 0 : index
      %c0_3 = arith.constant 0 : index
      %c0_4 = arith.constant 0 : index
      %c0_5 = arith.constant 0 : index
      %9 = vector.load %arg3[%c0, %c0_3, %c0_4, %c0_5] : memref<1x1x8x8xf32, #tpu.memory_space<vmem>>, vector<1x1x8x8xf32>
      %10 = vector.shape_cast %9 : vector<1x1x8x8xf32> to vector<8x8xf32>
      %cst = arith.constant 0.353553385 : f32
      %11 = vector.broadcast %cst : f32 to vector<8x8xf32>
      %12 = arith.mulf %10, %11 : vector<8x8xf32>
      %c0_6 = arith.constant 0 : index
      %c0_7 = arith.constant 0 : index
      %13 = vector.load %arg7[%c0_6, %c0_7] : memref<8x8xf32, #tpu.memory_space<vmem>>, vector<8x8xf32>
      tpu.vector_store %arg7[%c0_6, %c0_7], %12 {strides = array<i32>} : memref<8x8xf32, #tpu.memory_space<vmem>>, vector<8x8xf32>,
      %cst_8 = arith.constant 0xFF800000 : f32
      %14 = vector.broadcast %cst_8 : f32 to vector<8x1xf32>
      %c0_9 = arith.constant 0 : index
      %c0_10 = arith.constant 0 : index
      %15 = vector.load %arg8[%c0_9, %c0_10] : memref<8x1xf32, #tpu.memory_space<vmem>>, vector<8x1xf32>
      tpu.vector_store %arg8[%c0_9, %c0_10], %14 {strides = array<i32>} : memref<8x1xf32, #tpu.memory_space<vmem>>, vector<8x1xf32>,
      %cst_11 = arith.constant 0.000000e+00 : f32
      %16 = vector.broadcast %cst_11 : f32 to vector<8x1xf32>
      %c0_12 = arith.constant 0 : index
      %c0_13 = arith.constant 0 : index
      %17 = vector.load %arg9[%c0_12, %c0_13] : memref<8x1xf32, #tpu.memory_space<vmem>>, vector<8x1xf32>
      tpu.vector_store %arg9[%c0_12, %c0_13], %16 {strides = array<i32>} : memref<8x1xf32, #tpu.memory_space<vmem>>, vector<8x1xf32>,
      %cst_14 = arith.constant 0.000000e+00 : f32
      %18 = vector.broadcast %cst_14 : f32 to vector<8x8xf32>
      %c0_15 = arith.constant 0 : index
      %c0_16 = arith.constant 0 : index
      %19 = vector.load %arg10[%c0_15, %c0_16] : memref<8x8xf32, #tpu.memory_space<vmem>>, vector<8x8xf32>
      tpu.vector_store %arg10[%c0_15, %c0_16], %18 {strides = array<i32>} : memref<8x8xf32, #tpu.memory_space<vmem>>, vector<8x8xf32>,
    } else {
    }
    %3 = arith.cmpi slt, %arg2, %arg1 : i32
    %4 = arith.extui %3 : i1 to i32
    %c0_i32_1 = arith.constant 0 : i32
    %5 = arith.cmpi ne, %4, %c0_i32_1 : i32
    scf.if %5 {
      %c0 = arith.constant 0 : index
      %c0_3 = arith.constant 0 : index
      %c0_4 = arith.constant 0 : index
      %c0_5 = arith.constant 0 : index
      %9 = vector.load %arg4[%c0, %c0_3, %c0_4, %c0_5] : memref<1x1x8x8xf32, #tpu.memory_space<vmem>>, vector<1x1x8x8xf32>
      %10 = vector.shape_cast %9 : vector<1x1x8x8xf32> to vector<8x8xf32>
      %c0_6 = arith.constant 0 : index
      %c0_7 = arith.constant 0 : index
      %c0_8 = arith.constant 0 : index
      %c0_9 = arith.constant 0 : index
      %11 = vector.load %arg5[%c0_6, %c0_7, %c0_8, %c0_9] : memref<1x1x8x8xf32, #tpu.memory_space<vmem>>, vector<1x1x8x8xf32>
      %12 = vector.shape_cast %11 : vector<1x1x8x8xf32> to vector<8x8xf32>
      %c0_10 = arith.constant 0 : index
      %c0_11 = arith.constant 0 : index
      %13 = vector.load %arg7[%c0_10, %c0_11] : memref<8x8xf32, #tpu.memory_space<vmem>>, vector<8x8xf32>
      %cst = arith.constant dense<0.000000e+00> : vector<8x8xf32>
      %14 = tpu.matmul %13, %10, %cst {dimension_numbers = #tpu.dot_dimension_numbers<[1], [1], [0], [0], [0, 0, 1, 0], [], []>} : vector<8x8xf32>, vector<8x8xf32>, vector<8x8xf32> -> vector<8x8xf32>
      %c0_12 = arith.constant 0 : index
      %c0_13 = arith.constant 0 : index
      %15 = vector.load %arg8[%c0_12, %c0_13] : memref<8x1xf32, #tpu.memory_space<vmem>>, vector<8x1xf32>
      %cst_14 = arith.constant dense<0xFF800000> : vector<8xf32>
      %16 = vector.multi_reduction <maximumf>, %14, %cst_14 [1] : vector<8x8xf32> to vector<8xf32>
      %17 = vector.shape_cast %16 : vector<8xf32> to vector<8x1xf32>
      %18 = arith.maximumf %15, %17 : vector<8x1xf32>
      %19 = arith.subf %15, %18 : vector<8x1xf32>
      %20 = math.exp %19 : vector<8x1xf32>
      %21 = vector.broadcast %18 : vector<8x1xf32> to vector<8x8xf32>
      %22 = arith.subf %14, %21 : vector<8x8xf32>
      %23 = math.exp %22 : vector<8x8xf32>
      %c0_15 = arith.constant 0 : index
      %c0_16 = arith.constant 0 : index
      %24 = vector.load %arg9[%c0_15, %c0_16] : memref<8x1xf32, #tpu.memory_space<vmem>>, vector<8x1xf32>
      %25 = arith.mulf %20, %24 : vector<8x1xf32>
      %cst_17 = arith.constant dense<0.000000e+00> : vector<8xf32>
      %26 = vector.multi_reduction <add>, %23, %cst_17 [1] : vector<8x8xf32> to vector<8xf32>
      %27 = vector.shape_cast %26 : vector<8xf32> to vector<8x1xf32>
      %28 = arith.addf %25, %27 : vector<8x1xf32>
      %c0_18 = arith.constant 0 : index
      %c0_19 = arith.constant 0 : index
      %29 = vector.load %arg9[%c0_18, %c0_19] : memref<8x1xf32, #tpu.memory_space<vmem>>, vector<8x1xf32>
      tpu.vector_store %arg9[%c0_18, %c0_19], %28 {strides = array<i32>} : memref<8x1xf32, #tpu.memory_space<vmem>>, vector<8x1xf32>,
      %c0_20 = arith.constant 0 : index
      %c0_21 = arith.constant 0 : index
      %30 = vector.load %arg10[%c0_20, %c0_21] : memref<8x8xf32, #tpu.memory_space<vmem>>, vector<8x8xf32>
      %31 = vector.broadcast %20 : vector<8x1xf32> to vector<8x8xf32>
      %32 = arith.mulf %31, %30 : vector<8x8xf32>
      %cst_22 = arith.constant dense<0.000000e+00> : vector<8x8xf32>
      %33 = tpu.matmul %23, %12, %cst_22 {dimension_numbers = #tpu.dot_dimension_numbers<[1], [0], [0], [1], [0, 0, 1, 1], [], []>} : vector<8x8xf32>, vector<8x8xf32>, vector<8x8xf32> -> vector<8x8xf32>
      %34 = arith.addf %32, %33 : vector<8x8xf32>
      %c0_23 = arith.constant 0 : index
      %c0_24 = arith.constant 0 : index
      %35 = vector.load %arg10[%c0_23, %c0_24] : memref<8x8xf32, #tpu.memory_space<vmem>>, vector<8x8xf32>
      tpu.vector_store %arg10[%c0_23, %c0_24], %34 {strides = array<i32>} : memref<8x8xf32, #tpu.memory_space<vmem>>, vector<8x8xf32>,
      %c0_25 = arith.constant 0 : index
      %c0_26 = arith.constant 0 : index
      %36 = vector.load %arg8[%c0_25, %c0_26] : memref<8x1xf32, #tpu.memory_space<vmem>>, vector<8x1xf32>
      tpu.vector_store %arg8[%c0_25, %c0_26], %18 {strides = array<i32>} : memref<8x1xf32, #tpu.memory_space<vmem>>, vector<8x1xf32>,
    } else {
    }
    %6 = arith.cmpi eq, %arg2, %arg1 : i32
    %7 = arith.extui %6 : i1 to i32
    %c0_i32_2 = arith.constant 0 : i32
    %8 = arith.cmpi ne, %7, %c0_i32_2 : i32
    scf.if %8 {
      %c0 = arith.constant 0 : index
      %c0_3 = arith.constant 0 : index
      %c0_4 = arith.constant 0 : index
      %c0_5 = arith.constant 0 : index
      %9 = vector.load %arg4[%c0, %c0_3, %c0_4, %c0_5] : memref<1x1x8x8xf32, #tpu.memory_space<vmem>>, vector<1x1x8x8xf32>
      %10 = vector.shape_cast %9 : vector<1x1x8x8xf32> to vector<8x8xf32>
      %c0_6 = arith.constant 0 : index
      %c0_7 = arith.constant 0 : index
      %c0_8 = arith.constant 0 : index
      %c0_9 = arith.constant 0 : index
      %11 = vector.load %arg5[%c0_6, %c0_7, %c0_8, %c0_9] : memref<1x1x8x8xf32, #tpu.memory_space<vmem>>, vector<1x1x8x8xf32>
      %12 = vector.shape_cast %11 : vector<1x1x8x8xf32> to vector<8x8xf32>
      %c0_10 = arith.constant 0 : index
      %c0_11 = arith.constant 0 : index
      %13 = vector.load %arg7[%c0_10, %c0_11] : memref<8x8xf32, #tpu.memory_space<vmem>>, vector<8x8xf32>
      %cst = arith.constant dense<0.000000e+00> : vector<8x8xf32>
      %14 = tpu.matmul %13, %10, %cst {dimension_numbers = #tpu.dot_dimension_numbers<[1], [1], [0], [0], [0, 0, 1, 0], [], []>} : vector<8x8xf32>, vector<8x8xf32>, vector<8x8xf32> -> vector<8x8xf32>
      %15 = tpu.iota {dimensions = array<i32: 0>} : vector<8x8xi32>
      %16 = tpu.iota {dimensions = array<i32: 1>} : vector<8x8xi32>
      %17 = arith.cmpi sle, %16, %15 : vector<8x8xi32>
      %cst_12 = arith.constant -1.000000e+30 : f32
      %18 = vector.broadcast %cst_12 : f32 to vector<8x8xf32>
      %19 = arith.select %17, %14, %18 : vector<8x8xi1>, vector<8x8xf32>
      %c0_13 = arith.constant 0 : index
      %c0_14 = arith.constant 0 : index
      %20 = vector.load %arg8[%c0_13, %c0_14] : memref<8x1xf32, #tpu.memory_space<vmem>>, vector<8x1xf32>
      %cst_15 = arith.constant dense<0xFF800000> : vector<8xf32>
      %21 = vector.multi_reduction <maximumf>, %19, %cst_15 [1] : vector<8x8xf32> to vector<8xf32>
      %22 = vector.shape_cast %21 : vector<8xf32> to vector<8x1xf32>
      %23 = arith.maximumf %20, %22 : vector<8x1xf32>
      %24 = arith.subf %20, %23 : vector<8x1xf32>
      %25 = math.exp %24 : vector<8x1xf32>
      %26 = vector.broadcast %23 : vector<8x1xf32> to vector<8x8xf32>
      %27 = arith.subf %19, %26 : vector<8x8xf32>
      %28 = math.exp %27 : vector<8x8xf32>
      %c0_16 = arith.constant 0 : index
      %c0_17 = arith.constant 0 : index
      %29 = vector.load %arg9[%c0_16, %c0_17] : memref<8x1xf32, #tpu.memory_space<vmem>>, vector<8x1xf32>
      %30 = arith.mulf %25, %29 : vector<8x1xf32>
      %cst_18 = arith.constant dense<0.000000e+00> : vector<8xf32>
      %31 = vector.multi_reduction <add>, %28, %cst_18 [1] : vector<8x8xf32> to vector<8xf32>
      %32 = vector.shape_cast %31 : vector<8xf32> to vector<8x1xf32>
      %33 = arith.addf %30, %32 : vector<8x1xf32>
      %c0_19 = arith.constant 0 : index
      %c0_20 = arith.constant 0 : index
      %34 = vector.load %arg9[%c0_19, %c0_20] : memref<8x1xf32, #tpu.memory_space<vmem>>, vector<8x1xf32>
      tpu.vector_store %arg9[%c0_19, %c0_20], %33 {strides = array<i32>} : memref<8x1xf32, #tpu.memory_space<vmem>>, vector<8x1xf32>,
      %c0_21 = arith.constant 0 : index
      %c0_22 = arith.constant 0 : index
      %35 = vector.load %arg10[%c0_21, %c0_22] : memref<8x8xf32, #tpu.memory_space<vmem>>, vector<8x8xf32>
      %36 = vector.broadcast %25 : vector<8x1xf32> to vector<8x8xf32>
      %37 = arith.mulf %36, %35 : vector<8x8xf32>
      %cst_23 = arith.constant dense<0.000000e+00> : vector<8x8xf32>
      %38 = tpu.matmul %28, %12, %cst_23 {dimension_numbers = #tpu.dot_dimension_numbers<[1], [0], [0], [1], [0, 0, 1, 1], [], []>} : vector<8x8xf32>, vector<8x8xf32>, vector<8x8xf32> -> vector<8x8xf32>
      %39 = arith.addf %37, %38 : vector<8x8xf32>
      %c0_24 = arith.constant 0 : index
      %c0_25 = arith.constant 0 : index
      %40 = vector.load %arg10[%c0_24, %c0_25] : memref<8x8xf32, #tpu.memory_space<vmem>>, vector<8x8xf32>
      tpu.vector_store %arg10[%c0_24, %c0_25], %39 {strides = array<i32>} : memref<8x8xf32, #tpu.memory_space<vmem>>, vector<8x8xf32>,
      %c0_26 = arith.constant 0 : index
      %c0_27 = arith.constant 0 : index
      %41 = vector.load %arg8[%c0_26, %c0_27] : memref<8x1xf32, #tpu.memory_space<vmem>>, vector<8x1xf32>
      tpu.vector_store %arg8[%c0_26, %c0_27], %23 {strides = array<i32>} : memref<8x1xf32, #tpu.memory_space<vmem>>, vector<8x1xf32>,
      %c0_28 = arith.constant 0 : index
      %c0_29 = arith.constant 0 : index
      %42 = vector.load %arg9[%c0_28, %c0_29] : memref<8x1xf32, #tpu.memory_space<vmem>>, vector<8x1xf32>
      %43 = tpu.reciprocal %42 {approx = true} : vector<8x1xf32> -> vector<8x1xf32>
      %c0_30 = arith.constant 0 : index
      %c0_31 = arith.constant 0 : index
      %44 = vector.load %arg10[%c0_30, %c0_31] : memref<8x8xf32, #tpu.memory_space<vmem>>, vector<8x8xf32>
      %45 = vector.broadcast %43 : vector<8x1xf32> to vector<8x8xf32>
      %46 = arith.mulf %44, %45 : vector<8x8xf32>
      %c0_32 = arith.constant 0 : index
      %c0_33 = arith.constant 0 : index
      %c0_34 = arith.constant 0 : index
      %47 = vector.load %arg6[%c0_32, %c0_33, %c0_34] : memref<1x8x8xf32, #tpu.memory_space<vmem>>, vector<1x8x8xf32>
      %48 = vector.shape_cast %47 : vector<1x8x8xf32> to vector<8x8xf32>
      %49 = vector.shape_cast %46 : vector<8x8xf32> to vector<1x8x8xf32>
      tpu.vector_store %arg6[%c0_32, %c0_33, %c0_34], %49 {strides = array<i32>} : memref<1x8x8xf32, #tpu.memory_space<vmem>>, vector<1x8x8xf32>,
    } else {
    }
    return
  }
  func.func @transform_0(%arg0: i32, %arg1: i32, %arg2: i32) -> (i32, i32, i32, i32) {
    %c0_i32 = arith.constant 0 : i32
    %c0_i32_0 = arith.constant 0 : i32
    %c0_i32_1 = arith.constant 0 : i32
    return %c0_i32, %arg0, %arg1, %c0_i32_0 : i32, i32, i32, i32
  }
  func.func @transform_1(%arg0: i32, %arg1: i32, %arg2: i32) -> (i32, i32, i32, i32) {
    %0 = arith.minsi %arg2, %arg1 : i32
    %c1_i32 = arith.constant 1 : i32
    %c0_i32 = arith.constant 0 : i32
    %c0_i32_0 = arith.constant 0 : i32
    return %c1_i32, %arg0, %0, %c0_i32 : i32, i32, i32, i32
  }
  func.func @transform_2(%arg0: i32, %arg1: i32, %arg2: i32) -> (i32, i32, i32, i32) {
    %0 = arith.minsi %arg2, %arg1 : i32
    %c2_i32 = arith.constant 2 : i32
    %c0_i32 = arith.constant 0 : i32
    %c0_i32_0 = arith.constant 0 : i32
    return %c2_i32, %arg0, %0, %c0_i32 : i32, i32, i32, i32
  }
  func.func @transform_3(%arg0: i32, %arg1: i32, %arg2: i32) -> (i32, i32, i32) {
    %c0_i32 = arith.constant 0 : i32
    %c0_i32_0 = arith.constant 0 : i32
    return %arg0, %arg1, %c0_i32 : i32, i32, i32
  }
}

module attributes {stable_mosaic.version = 11 : i64} {
  func.func @_head_merge_proj_kernel(%arg0: i32, %arg1: i32, %arg2: i32, %arg3: i32, %arg4: memref<1x1x8x8xf32, #tpu.memory_space<vmem>>, %arg5: memref<1x8x32xf32, #tpu.memory_space<vmem>>, %arg6: memref<1x32xf32, #tpu.memory_space<vmem>>, %arg7: memref<1x8x32xf32, #tpu.memory_space<vmem>>, %arg8: memref<8x32xf32, #tpu.memory_space<vmem>>) attributes {dimension_semantics = [#tpu.dimension_semantics<parallel>, #tpu.dimension_semantics<parallel>, #tpu.dimension_semantics<parallel>, #tpu.dimension_semantics<arbitrary>], iteration_bounds = array<i64: 2, 1, 1, 4>, scalar_prefetch = 0 : i64, scratch_operands = 1 : i64, tpu.core_type = #tpu.core_type<tc>, window_params = [{transform_indices = @transform_0, window_bounds = array<i64: 1, 1, 8, 8>}, {transform_indices = @transform_1, window_bounds = array<i64: 1, 8, 32>}, {transform_indices = @transform_2, window_bounds = array<i64: 1, 32>}, {transform_indices = @transform_3, window_bounds = array<i64: 1, 8, 32>}]} {
    %c0_i32 = arith.constant 0 : i32
    %0 = arith.cmpi eq, %arg3, %c0_i32 : i32
    %1 = arith.extui %0 : i1 to i32
    %c0_i32_0 = arith.constant 0 : i32
    %2 = arith.cmpi ne, %1, %c0_i32_0 : i32
    scf.if %2 {
      %cst_12 = arith.constant 0.000000e+00 : f32
      %14 = vector.broadcast %cst_12 : f32 to vector<8x32xf32>
      %c0_13 = arith.constant 0 : index
      %c0_14 = arith.constant 0 : index
      %15 = vector.load %arg8[%c0_13, %c0_14] : memref<8x32xf32, #tpu.memory_space<vmem>>, vector<8x32xf32>
      tpu.vector_store %arg8[%c0_13, %c0_14], %14 {strides = array<i32>} : memref<8x32xf32, #tpu.memory_space<vmem>>, vector<8x32xf32>,
    } else {
    }
    %c0 = arith.constant 0 : index
    %c0_1 = arith.constant 0 : index
    %3 = vector.load %arg8[%c0, %c0_1] : memref<8x32xf32, #tpu.memory_space<vmem>>, vector<8x32xf32>
    %c0_2 = arith.constant 0 : index
    %c0_3 = arith.constant 0 : index
    %c0_4 = arith.constant 0 : index
    %c0_5 = arith.constant 0 : index
    %4 = vector.load %arg4[%c0_2, %c0_3, %c0_4, %c0_5] : memref<1x1x8x8xf32, #tpu.memory_space<vmem>>, vector<1x1x8x8xf32>
    %5 = vector.shape_cast %4 : vector<1x1x8x8xf32> to vector<8x8xf32>
    %c0_6 = arith.constant 0 : index
    %c0_7 = arith.constant 0 : index
    %c0_8 = arith.constant 0 : index
    %6 = vector.load %arg5[%c0_6, %c0_7, %c0_8] : memref<1x8x32xf32, #tpu.memory_space<vmem>>, vector<1x8x32xf32>
    %7 = vector.shape_cast %6 : vector<1x8x32xf32> to vector<8x32xf32>
    %cst = arith.constant dense<0.000000e+00> : vector<8x32xf32>
    %8 = tpu.matmul %5, %7, %cst {dimension_numbers = #tpu.dot_dimension_numbers<[1], [0], [0], [1], [0, 0, 1, 1], [], []>} : vector<8x8xf32>, vector<8x32xf32>, vector<8x32xf32> -> vector<8x32xf32>
    %9 = arith.addf %3, %8 : vector<8x32xf32>
    %c0_9 = arith.constant 0 : index
    %c0_10 = arith.constant 0 : index
    %10 = vector.load %arg8[%c0_9, %c0_10] : memref<8x32xf32, #tpu.memory_space<vmem>>, vector<8x32xf32>
    tpu.vector_store %arg8[%c0_9, %c0_10], %9 {strides = array<i32>} : memref<8x32xf32, #tpu.memory_space<vmem>>, vector<8x32xf32>,
    %c3_i32 = arith.constant 3 : i32
    %11 = arith.cmpi eq, %arg3, %c3_i32 : i32
    %12 = arith.extui %11 : i1 to i32
    %c0_i32_11 = arith.constant 0 : i32
    %13 = arith.cmpi ne, %12, %c0_i32_11 : i32
    scf.if %13 {
      %c0_12 = arith.constant 0 : index
      %c0_13 = arith.constant 0 : index
      %14 = vector.load %arg8[%c0_12, %c0_13] : memref<8x32xf32, #tpu.memory_space<vmem>>, vector<8x32xf32>
      %c0_14 = arith.constant 0 : index
      %c0_15 = arith.constant 0 : index
      %15 = vector.load %arg6[%c0_14, %c0_15] : memref<1x32xf32, #tpu.memory_space<vmem>>, vector<1x32xf32>
      %16 = vector.broadcast %15 : vector<1x32xf32> to vector<8x32xf32>
      %17 = arith.addf %14, %16 : vector<8x32xf32>
      %c0_16 = arith.constant 0 : index
      %c0_17 = arith.constant 0 : index
      %c0_18 = arith.constant 0 : index
      %18 = vector.load %arg7[%c0_16, %c0_17, %c0_18] : memref<1x8x32xf32, #tpu.memory_space<vmem>>, vector<1x8x32xf32>
      %19 = vector.shape_cast %18 : vector<1x8x32xf32> to vector<8x32xf32>
      %20 = vector.shape_cast %17 : vector<8x32xf32> to vector<1x8x32xf32>
      tpu.vector_store %arg7[%c0_16, %c0_17, %c0_18], %20 {strides = array<i32>} : memref<1x8x32xf32, #tpu.memory_space<vmem>>, vector<1x8x32xf32>,
    } else {
    }
    return
  }
  func.func @transform_0(%arg0: i32, %arg1: i32, %arg2: i32, %arg3: i32) -> (i32, i32, i32, i32) {
    %c0_i32 = arith.constant 0 : i32
    %c0_i32_0 = arith.constant 0 : i32
    return %arg0, %arg3, %arg1, %c0_i32 : i32, i32, i32, i32
  }
  func.func @transform_1(%arg0: i32, %arg1: i32, %arg2: i32, %arg3: i32) -> (i32, i32, i32) {
    %c0_i32 = arith.constant 0 : i32
    %c0_i32_0 = arith.constant 0 : i32
    return %arg3, %c0_i32, %arg2 : i32, i32, i32
  }
  func.func @transform_2(%arg0: i32, %arg1: i32, %arg2: i32, %arg3: i32) -> (i32, i32) {
    %c0_i32 = arith.constant 0 : i32
    %c0_i32_0 = arith.constant 0 : i32
    return %c0_i32, %arg2 : i32, i32
  }
  func.func @transform_3(%arg0: i32, %arg1: i32, %arg2: i32, %arg3: i32) -> (i32, i32, i32) {
    %c0_i32 = arith.constant 0 : i32
    return %arg0, %arg1, %arg2 : i32, i32, i32
  }
}

</mosaic_0001>

<llo_original>
// kernel: causal_self_attention.3
$region0: #{causal_self_attention.3}
  #allocation0 [shape = 'u32[]', space=smem, size = 0x4, offset = 0x4, fixed_abs, tag = 'smem constant byte address 0x4 - core index']
  #allocation1 [shape = 'u32[144,128]{1,0:T(1,128)}', space=vmem, size = 0x12000, scoped, tag = 'internal scratch']
  #allocation2 [shape = 'f32[16,96]{1,0:T(8,128)}', space=vmem, size = 0x2000, scoped, tag = 'scratch operand']
  %s0 = inlined_call_operand.hbm [shape: f32[16,32], index: 0, kind: input, shape index: {}]
  %s1 = inlined_call_operand.hbm [shape: f32[32,96], index: 1, kind: input, shape index: {}]
  %s2 = inlined_call_operand.vmem [shape: f32[1,96], index: 2, kind: input, shape index: {}]
  %s3 = inlined_call_operand.vmem [shape: f32[16,96], index: 3, kind: output, shape index: {}]
  %s4 = sld [smem:[#allocation0]]
  $region38: #{causal_self_attention.3} parent=0
    _
  %s6 = ssub.s32 1, %s4
  %s7 = scalar_select 0, %s6, %s4
  $region1: #{causal_self_attention.3} parent=0
    #allocation3 [shape = 'u8[8192]{0}', space=vmem, size = 0x2000, scoped, tag = 'input window, operand 0, single buffered']
    #allocation4 [shape = 's32[1]{0}', space=sflag, size = 0x4, scoped, tag = 'scoped memory for causal_self_attention.3']
    #allocation5 [shape = 'u8[16384]{0}', space=vmem, size = 0x4000, scoped, tag = 'input window, operand 1, single buffered']
    #allocation6 [shape = 's32[1]{0}', space=sflag, size = 0x4, scoped, tag = 'scoped memory for causal_self_attention.3']
    %8 = vsyncpa [#allocation4], 0
    %9 = vsyncpa [#allocation6], 0
    // Predicated region
    $region2: #{causal_self_attention.3} parent=1 // pred_check
      _
    $region3: #{causal_self_attention.3} parent=1 // pred_check_branch
      %11 = sbr.rel (0) target = $region5
    $region4: #{causal_self_attention.3} parent=1 // pred_region
      %s13 = ssub.s32 256, 256
      %14 = vsyncadd [#allocation4], %s13
      %s15 = sshll.u32 [#allocation3], 4
      %s16 = int_to_ptr.vmem [resolvable:$true] %s15
      %21 = dma.hbm_to_vmem [thread:$0]  %s0, 256, %s16, [#allocation4], 128, 128, 8
    $region5: #{causal_self_attention.3} parent=1 // pred_fallthru
      _
    // Predicated region
    $region6: #{causal_self_attention.3} parent=1 // pred_check
      _
    $region7: #{causal_self_attention.3} parent=1 // pred_check_branch
      %23 = sbr.rel (0) target = $region9
    $region8: #{causal_self_attention.3} parent=1 // pred_region
      %s25 = ssub.s32 512, 512
      %26 = vsyncadd [#allocation6], %s25
      %s27 = sshll.u32 [#allocation5], 4
      %s28 = int_to_ptr.vmem [resolvable:$true] %s27
      %33 = dma.hbm_to_vmem [thread:$0]  %s1, 512, %s28, [#allocation6], 128, 128, 8
    $region9: #{causal_self_attention.3} parent=1 // pred_fallthru
      _
    // Predicated region
    $region10: #{causal_self_attention.3} parent=1 // pred_check
      _
    $region11: #{causal_self_attention.3} parent=1 // pred_check_branch
      %35 = sbr.rel (0) target = $region13
    $region12: #{causal_self_attention.3} parent=1 // pred_region
      _
    $region13: #{causal_self_attention.3} parent=1 // pred_fallthru
      _
    // Predicated region
    $region14: #{causal_self_attention.3} parent=1 // pred_check
      _
    $region15: #{causal_self_attention.3} parent=1 // pred_check_branch
      %37 = sbr.rel (0) target = $region17
    $region16: #{causal_self_attention.3} parent=1 // pred_region
      %38 = dma.done [#allocation4], 256
    $region17: #{causal_self_attention.3} parent=1 // pred_fallthru
      _
    // Predicated region
    $region18: #{causal_self_attention.3} parent=1 // pred_check
      _
    $region19: #{causal_self_attention.3} parent=1 // pred_check_branch
      %40 = sbr.rel (0) target = $region21
    $region20: #{causal_self_attention.3} parent=1 // pred_region
      %41 = dma.done [#allocation6], 512
    $region21: #{causal_self_attention.3} parent=1 // pred_fallthru
      _
    %p42 = scmp.eq.s32.totalorder 0, 0
    // Predicated region
    $region22: #{causal_self_attention.3} parent=1 // pred_check
      %p43 = pneg %p42
    $region23: #{causal_self_attention.3} parent=1 // pred_check_branch
      %45 = sbr.rel (%p43) target = $region25
    $region24: #{causal_self_attention.3} parent=1 // pred_region
      %vm46 = vcmask 785408
      %47 = vst.msk [vmem:[#allocation2] sm:$0xff] %vm46, 0.0
      %48 = vst.msk [vmem:[#allocation2 + $0x8] sm:$0xff] %vm46, 0.0
    $region25: #{causal_self_attention.3} parent=1 // pred_fallthru
      _
    %v49 = vld [vmem:[#allocation2] sm:$0xff]
    %v50 = vld [vmem:[#allocation2 + $0x8] sm:$0xff]
    %v51 = vld [vmem:[#allocation3] sm:$0xff]
    %v52 = vld [vmem:[#allocation3 + $0x8] sm:$0xff]
    %v53 = vld [vmem:[#allocation5] sm:$0xff]
    %v54 = vld [vmem:[#allocation5 + $0x8] sm:$0xff]
    %v55 = vld [vmem:[#allocation5 + $0x10] sm:$0xff]
    %v56 = vld [vmem:[#allocation5 + $0x18] sm:$0xff]
    %vm57 = vcmask 261120
    %v59 = vsel %vm57, %v51, 0
    %v62 = vsel %vm57, %v52, 0
    %64 = vmatprep.subr.mxu0 0.0
    %65 = vmatpush1.msra.mxu0 0.0
    %66 = vmatprep.subr.mxu0 0.0
    %67 = vmatpush1.msra.mxu0 0.0
    %68 = vmatprep.subr.mxu0 0.0
    %69 = vmatpush1.msra.mxu0 0.0
    %70 = vmatprep.subr.mxu0 0.0
    %71 = vmatpush1.msra.mxu0 0.0
    %72 = vmatprep.subr.mxu0 0.0
    %73 = vmatpush1.msra.mxu0 0.0
    %74 = vmatprep.subr.mxu0 0.0
    %75 = vmatpush1.msra.mxu0 0.0
    %76 = vmatprep.subr.mxu0 0.0
    %77 = vmatpush1.msra.mxu0 0.0
    %78 = vmatprep.subr.mxu0 0.0
    %79 = vmatpush1.msra.mxu0 0.0
    %80 = vmatprep.subr.mxu0 0.0
    %81 = vmatpush1.msra.mxu0 0.0
    %82 = vmatprep.subr.mxu0 0.0
    %83 = vmatpush1.msra.mxu0 0.0
    %84 = vmatprep.subr.mxu0 0.0
    %85 = vmatpush1.msra.mxu0 0.0
    %86 = vmatprep.subr.mxu0 0.0
    %87 = vmatpush1.msra.mxu0 0.0
    %88 = vmatprep.subr.mxu0 0.0
    %89 = vmatpush1.msra.mxu0 %v56
    %90 = vmatprep.subr.mxu0 0.0
    %91 = vmatpush1.msra.mxu0 %v55
    %92 = vmatprep.subr.mxu0 0.0
    %93 = vmatpush1.msra.mxu0 %v54
    %94 = vmatprep.subr.mxu0 0.0
    %95 = vmatpush1.msra.mxu0 %v53
    %96 = vmatprep.subr.mxu0 0.0
    %97 = vmatpush2.msra.mxu0 0.0
    %98 = vmatprep.subr.mxu0 0.0
    %99 = vmatpush2.msra.mxu0 0.0
    %100 = vmatprep.subr.mxu0 0.0
    %101 = vmatpush2.msra.mxu0 0.0
    %102 = vmatprep.subr.mxu0 0.0
    %103 = vmatpush2.msra.mxu0 0.0
    %104 = vmatprep.subr.mxu0 0.0
    %105 = vmatpush2.msra.mxu0 0.0
    %106 = vmatprep.subr.mxu0 0.0
    %107 = vmatpush2.msra.mxu0 0.0
    %108 = vmatprep.subr.mxu0 0.0
    %109 = vmatpush2.msra.mxu0 0.0
    %110 = vmatprep.subr.mxu0 0.0
    %111 = vmatpush2.msra.mxu0 0.0
    %112 = vmatprep.subr.mxu0 0.0
    %113 = vmatpush2.msra.mxu0 0.0
    %114 = vmatprep.subr.mxu0 0.0
    %115 = vmatpush2.msra.mxu0 0.0
    %116 = vmatprep.subr.mxu0 0.0
    %117 = vmatpush2.msra.mxu0 0.0
    %118 = vmatprep.subr.mxu0 0.0
    %119 = vmatpush2.msra.mxu0 0.0
    %120 = vmatprep.subr.mxu0 0.0
    %121 = vmatpush2.msra.mxu0 0.0
    %122 = vmatprep.subr.mxu0 0.0
    %123 = vmatpush2.msra.mxu0 0.0
    %124 = vmatprep.subr.mxu0 0.0
    %125 = vmatpush2.msra.mxu0 0.0
    %126 = vmatprep.subr.mxu0 0.0
    %127 = vmatpush2.msra.mxu0 0.0
    %128 = vmatprep.mubr.f32.mxu0 0.0
    %129 = vmatmul.mubr.f32.gmra.mxu0 %v59
    %v130 = vpop.f32.mrf.mxu0
    %v131 = vadd.f32 0.0, %v130
    %v132 = vpop.f32.mrf.mxu0
    %133 = vmatprep.mubr.f32.mxu0 0.0
    %134 = vmatmul.mubr.f32.gmra.mxu0 %v62
    %v135 = vpop.f32.mrf.mxu0
    %v136 = vadd.f32 0.0, %v135
    %v137 = vpop.f32.mrf.mxu0
    %138 = vdwg.mxu0
    %v139 = vadd.f32 %v49, %v131
    %v140 = vadd.f32 %v50, %v136
    %vm141 = vcmask 785408
    %142 = vst.msk [vmem:[#allocation2] sm:$0xff] %vm141, %v139
    %143 = vst.msk [vmem:[#allocation2 + $0x8] sm:$0xff] %vm141, %v140
    // Predicated region
    $region26: #{causal_self_attention.3} parent=1 // pred_check
      %p144 = pneg %p42
    $region27: #{causal_self_attention.3} parent=1 // pred_check_branch
      %146 = sbr.rel (%p144) target = $region29
    $region28: #{causal_self_attention.3} parent=1 // pred_region
      %v147 = vld [vmem:[#allocation2] sm:$0xff]
      %v148 = vld [vmem:[#allocation2 + $0x8] sm:$0xff]
      %v149 = vld [vmem:[%s2] sm:$0x1]
      %v151 = vlaneseq
      %v152 = vshrl.u32 %v151, 7
      %v153 = vsub.s32 0, %v152
      %v154 = vrot.slane %v149, %v153
      %v156 = vadd.f32 %v147, %v154
      %v157 = vadd.f32 %v148, %v154
      %158 = vst.msk [vmem:[%s3] sm:$0xff] %vm141, %v156
      %159 = vst.msk [vmem:[%s3 + $0x8] sm:$0xff] %vm141, %v157
    $region29: #{causal_self_attention.3} parent=1 // pred_fallthru
      _
    // Predicated region
    $region30: #{causal_self_attention.3} parent=1 // pred_check
      _
    $region31: #{causal_self_attention.3} parent=1 // pred_check_branch
      %161 = sbr.rel (0) target = $region33
    $region32: #{causal_self_attention.3} parent=1 // pred_region
      _
    $region33: #{causal_self_attention.3} parent=1 // pred_fallthru
      _
    // Predicated region
    $region34: #{causal_self_attention.3} parent=1 // pred_check
      _
    $region35: #{causal_self_attention.3} parent=1 // pred_check_branch
      %163 = sbr.rel (0) target = $region37
    $region36: #{causal_self_attention.3} parent=1 // pred_region
      _
    $region37: #{causal_self_attention.3} parent=1 // pred_fallthru
      _
    %164 = vsyncpa [#allocation4], 1
    %165 = vsyncpa [#allocation6], 1

// kernel: causal_self_attention.4
$region0: #{causal_self_attention.4}
  #allocation0 [shape = 'u32[]', space=smem, size = 0x4, offset = 0x4, fixed_abs, tag = 'smem constant byte address 0x4 - core index']
  #allocation1 [shape = 'u32[144,128]{1,0:T(1,128)}', space=vmem, size = 0x12000, scoped, tag = 'internal scratch']
  #allocation2 [shape = 'f32[8,8]{1,0:T(8,128)}', space=vmem, size = 0x1000, scoped, tag = 'scratch operand']
  #allocation3 [shape = 'f32[8,1]{1,0:T(8,128)}', space=vmem, size = 0x1000, scoped, tag = 'scratch operand']
  #allocation4 [shape = 'f32[8,1]{1,0:T(8,128)}', space=vmem, size = 0x1000, scoped, tag = 'scratch operand']
  #allocation5 [shape = 'f32[8,8]{1,0:T(8,128)}', space=vmem, size = 0x1000, scoped, tag = 'scratch operand']
  %s0 = inlined_call_operand.vmem [shape: f32[3,8,8,8], index: 0, kind: input, shape index: {}, may-alias: {0,1,2}]
  %s1 = inlined_call_operand.vmem [shape: f32[3,8,8,8], index: 1, kind: input, shape index: {}, may-alias: {0,1,2}]
  %s2 = inlined_call_operand.vmem [shape: f32[3,8,8,8], index: 2, kind: input, shape index: {}, may-alias: {0,1,2}]
  %s3 = inlined_call_operand.vmem [shape: f32[8,8,8], index: 3, kind: output, shape index: {}]
  %s4 = sld [smem:[#allocation0]]
  $region57: #{causal_self_attention.4} parent=0
    _
  %s6 = ssub.s32 1, %s4
  %s7 = scalar_select 0, %s6, %s4
  loop: start=0, step=1, limit=10
  $region2: #{causal_self_attention.4} parent=0 // loop_pre_header
    _
  $region3: #{causal_self_attention.4} parent=0 // loop_header
    %s9 = sphi 0, %s13
    %p10 = scmp.ge.s32.totalorder %s9, 10
    %s16 = sphi 0, %s35
    %s17 = sphi 0, %s31
    %s18 = sphi 0, %s27
    %s19 = sphi 0, %s16
    %s20 = sphi 0, %s17
    %s21 = sphi 0, %s18
    %s22 = sphi 0, %s19
    %s23 = sphi 0, %s20
    %s24 = sphi 0, %s21
    %s40 = sphi 0, %s42
    %s43 = sphi 0, %s40
    %s44 = sphi 0, %s43
    %s60 = sphi 0, %s44
    %s72 = sphi 0, %s74
    %s75 = sphi 0, %s72
    %s76 = sphi 0, %s75
    %s92 = sphi 0, %s76
    %s104 = sphi 0, %s106
    %s107 = sphi 0, %s104
    %s108 = sphi 0, %s107
    %s124 = sphi 0, %s108
    %s132 = sphi 0, %s134
    %s135 = sphi 0, %s132
    %s136 = sphi 0, %s135
    %s152 = sphi 0, %s136
  $region4: #{causal_self_attention.4} parent=0 // loop_header_branch
    %12 = sbr.rel (%p10) target = $region8
  $region5: #{causal_self_attention.4} parent=0 // loop_body
    %s14 = ssub.s32 %s9, 1
    %s15 = ssub.s32 %s9, 2
    %s25 = sadd.s32 1, %s18
    %p26 = scmp.ge.s32.totalorder %s25, 1
    %s27 = scalar_select %p26, 0, %s25
    %s28 = sadd.s32 1, %s17
    %s29 = scalar_select %p26, %s28, %s17
    %p30 = scmp.ge.s32.totalorder %s29, 1
    %s31 = scalar_select %p30, 0, %s29
    %s32 = sadd.s32 1, %s16
    %s33 = scalar_select %p30, %s32, %s16
    %p34 = scmp.ge.s32.totalorder %s33, 8
    %s35 = scalar_select %p34, 0, %s33
    %s36 = ssub.s32 %s16, %s35
    %s37 = ssub.s32 %s17, %s31
    %s38 = sor.u32 %s36, %s37
    %p39 = scmp.eq.s32.totalorder %s38, 0
    %s41 = sadd.s32 %s40, 1
    %s42 = scalar_select %p39, %s40, %s41
    %p45 = pneg %p39
    %p46 = scmp.eq.s32.totalorder %s9, 7
    %p47 = por %p45, %p46
    %p48 = scmp.ne.s32.totalorder %s40, %s43
    %p49 = scmp.eq.s32.totalorder %s9, 0
    %p50 = por %p48, %p49
    %p51 = scmp.ne.s32.totalorder %s40, %s43
    %p52 = scmp.eq.s32.totalorder %s14, 7
    %p53 = por %p51, %p52
    %p54 = scmp.ne.s32.totalorder %s43, %s44
    %p55 = scmp.eq.s32.totalorder %s14, 0
    %p56 = por %p54, %p55
    %p57 = scmp.ne.s32.totalorder %s43, %s44
    %p58 = scmp.eq.s32.totalorder %s15, 7
    %p59 = por %p57, %p58
    %p61 = scmp.ne.s32.totalorder %s44, %s60
    %p62 = scmp.eq.s32.totalorder %s15, 0
    %p63 = por %p61, %p62
    %p64 = scmp.lt.s32.totalorder %s18, %s17
    %s65 = scalar_select %p64, %s18, %s17
    %p66 = scmp.lt.s32.totalorder %s27, %s31
    %s67 = scalar_select %p66, %s27, %s31
    %s68 = ssub.s32 %s16, %s35
    %s69 = ssub.s32 %s65, %s67
    %s70 = sor.u32 %s68, %s69
    %p71 = scmp.eq.s32.totalorder %s70, 0
    %s73 = sadd.s32 %s72, 1
    %s74 = scalar_select %p71, %s72, %s73
    %p77 = pneg %p71
    %p78 = scmp.eq.s32.totalorder %s9, 7
    %p79 = por %p77, %p78
    %p80 = scmp.ne.s32.totalorder %s72, %s75
    %p81 = scmp.eq.s32.totalorder %s9, 0
    %p82 = por %p80, %p81
    %p83 = scmp.ne.s32.totalorder %s72, %s75
    %p84 = scmp.eq.s32.totalorder %s14, 7
    %p85 = por %p83, %p84
    %p86 = scmp.ne.s32.totalorder %s75, %s76
    %p87 = scmp.eq.s32.totalorder %s14, 0
    %p88 = por %p86, %p87
    %p89 = scmp.ne.s32.totalorder %s75, %s76
    %p90 = scmp.eq.s32.totalorder %s15, 7
    %p91 = por %p89, %p90
    %p93 = scmp.ne.s32.totalorder %s76, %s92
    %p94 = scmp.eq.s32.totalorder %s15, 0
    %p95 = por %p93, %p94
    %p96 = scmp.lt.s32.totalorder %s18, %s17
    %s97 = scalar_select %p96, %s18, %s17
    %p98 = scmp.lt.s32.totalorder %s27, %s31
    %s99 = scalar_select %p98, %s27, %s31
    %s100 = ssub.s32 %s16, %s35
    %s101 = ssub.s32 %s97, %s99
    %s102 = sor.u32 %s100, %s101
    %p103 = scmp.eq.s32.totalorder %s102, 0
    %s105 = sadd.s32 %s104, 1
    %s106 = scalar_select %p103, %s104, %s105
    %p109 = pneg %p103
    %p110 = scmp.eq.s32.totalorder %s9, 7
    %p111 = por %p109, %p110
    %p112 = scmp.ne.s32.totalorder %s104, %s107
    %p113 = scmp.eq.s32.totalorder %s9, 0
    %p114 = por %p112, %p113
    %p115 = scmp.ne.s32.totalorder %s104, %s107
    %p116 = scmp.eq.s32.totalorder %s14, 7
    %p117 = por %p115, %p116
    %p118 = scmp.ne.s32.totalorder %s107, %s108
    %p119 = scmp.eq.s32.totalorder %s14, 0
    %p120 = por %p118, %p119
    %p121 = scmp.ne.s32.totalorder %s107, %s108
    %p122 = scmp.eq.s32.totalorder %s15, 7
    %p123 = por %p121, %p122
    %p125 = scmp.ne.s32.totalorder %s108, %s124
    %p126 = scmp.eq.s32.totalorder %s15, 0
    %p127 = por %p125, %p126
    %s128 = ssub.s32 %s16, %s35
    %s129 = ssub.s32 %s17, %s31
    %s130 = sor.u32 %s128, %s129
    %p131 = scmp.eq.s32.totalorder %s130, 0
    %s133 = sadd.s32 %s132, 1
    %s134 = scalar_select %p131, %s132, %s133
    %p137 = pneg %p131
    %p138 = scmp.eq.s32.totalorder %s9, 7
    %p139 = por %p137, %p138
    %p140 = scmp.ne.s32.totalorder %s132, %s135
    %p141 = scmp.eq.s32.totalorder %s9, 0
    %p142 = por %p140, %p141
    %p143 = scmp.ne.s32.totalorder %s132, %s135
    %p144 = scmp.eq.s32.totalorder %s14, 7
    %p145 = por %p143, %p144
    %p146 = scmp.ne.s32.totalorder %s135, %s136
    %p147 = scmp.eq.s32.totalorder %s14, 0
    %p148 = por %p146, %p147
    %p149 = scmp.ne.s32.totalorder %s135, %s136
    %p150 = scmp.eq.s32.totalorder %s15, 7
    %p151 = por %p149, %p150
    %p153 = scmp.ne.s32.totalorder %s136, %s152
    %p154 = scmp.eq.s32.totalorder %s15, 0
    %p155 = por %p153, %p154
    %p156 = scmp.le.s32.totalorder 1, %s9
    %p157 = scmp.lt.s32.totalorder %s9, 9
    %p158 = pnand %p156, %p157
    %p159 = pneg %p158
    // Predicated region
    $region9: #{causal_self_attention.4} parent=5 // pred_check
      _
    $region10: #{causal_self_attention.4} parent=5 // pred_check_branch
      %161 = sbr.rel (%p158) target = $region12
    $region11: #{causal_self_attention.4} parent=5 // pred_region
      %s162 = ssub.s32 %s9, 1
    $region12: #{causal_self_attention.4} parent=5 // pred_fallthru
      _
    %p163 = scmp.lt.s32.totalorder %s9, 8
    // Predicated region
    $region13: #{causal_self_attention.4} parent=5 // pred_check
      %p164 = pneg %p163
    $region14: #{causal_self_attention.4} parent=5 // pred_check_branch
      %166 = sbr.rel (%p164) target = $region16
    $region15: #{causal_self_attention.4} parent=5 // pred_region
      // Predicated region
      $region17: #{causal_self_attention.4} parent=15 // pred_check
        %p167 = pneg %p50
      $region18: #{causal_self_attention.4} parent=15 // pred_check_branch
        %169 = sbr.rel (%p167) target = $region20
      $region19: #{causal_self_attention.4} parent=15 // pred_region
        %p170 = scmp.lt.s32.totalorder %s16, 7
        %s171 = scalar_select %p170, %s16, 7
        %p172 = scmp.lt.s32.totalorder %s17, 0
        %s173 = scalar_select %p172, %s17, 0
        %s174 = sadd.s32 %s173, %s171
        %s175 = smul.addr %s174, 8
        %s176 = scalar_lea.vmem %s0, %s175
      $region20: #{causal_self_attention.4} parent=15 // pred_fallthru
        _
      // Predicated region
      $region21: #{causal_self_attention.4} parent=15 // pred_check
        %p177 = pneg %p82
      $region22: #{causal_self_attention.4} parent=15 // pred_check_branch
        %179 = sbr.rel (%p177) target = $region24
      $region23: #{causal_self_attention.4} parent=15 // pred_region
        %p180 = scmp.lt.s32.totalorder %s18, %s17
        %s181 = scalar_select %p180, %s18, %s17
        %p182 = scmp.lt.s32.totalorder %s16, 7
        %s183 = scalar_select %p182, %s16, 7
        %p184 = scmp.lt.s32.totalorder %s181, 0
        %s185 = scalar_select %p184, %s181, 0
        %s186 = sadd.s32 %s185, %s183
        %s187 = sadd.s32 %s186, 8
        %s188 = smul.addr %s187, 8
        %s189 = scalar_lea.vmem %s1, %s188
        %p190 = scmp.lt.s32.totalorder %s18, %s17
        %s191 = scalar_select %p190, %s18, %s17
      $region24: #{causal_self_attention.4} parent=15 // pred_fallthru
        _
      // Predicated region
      $region25: #{causal_self_attention.4} parent=15 // pred_check
        %p192 = pneg %p114
      $region26: #{causal_self_attention.4} parent=15 // pred_check_branch
        %194 = sbr.rel (%p192) target = $region28
      $region27: #{causal_self_attention.4} parent=15 // pred_region
        %p195 = scmp.lt.s32.totalorder %s18, %s17
        %s196 = scalar_select %p195, %s18, %s17
        %p197 = scmp.lt.s32.totalorder %s16, 7
        %s198 = scalar_select %p197, %s16, 7
        %p199 = scmp.lt.s32.totalorder %s196, 0
        %s200 = scalar_select %p199, %s196, 0
        %s201 = sadd.s32 %s200, %s198
        %s202 = sadd.s32 %s201, 16
        %s203 = smul.addr %s202, 8
        %s204 = scalar_lea.vmem %s2, %s203
        %p205 = scmp.lt.s32.totalorder %s18, %s17
        %s206 = scalar_select %p205, %s18, %s17
      $region28: #{causal_self_attention.4} parent=15 // pred_fallthru
        _
    $region16: #{causal_self_attention.4} parent=5 // pred_fallthru
      _
    %p207 = scmp.le.s32.totalorder 1, %s9
    %p208 = scmp.lt.s32.totalorder %s9, 9
    %p209 = pnand %p207, %p208
    %p210 = pneg %p209
    // Predicated region
    $region29: #{causal_self_attention.4} parent=5 // pred_check
      _
    $region30: #{causal_self_attention.4} parent=5 // pred_check_branch
      %212 = sbr.rel (%p209) target = $region32
    $region31: #{causal_self_attention.4} parent=5 // pred_region
      %s213 = ssub.s32 %s9, 1
      %p214 = scmp.lt.s32.totalorder %s19, 7
      %s215 = scalar_select %p214, %s19, 7
      %p216 = scmp.lt.s32.totalorder %s20, 0
      %s217 = scalar_select %p216, %s20, 0
      %s218 = sadd.s32 %s217, %s215
      %s219 = smul.addr %s218, 8
      %s220 = scalar_lea.vmem %s0, %s219
      %p221 = pneg %p56
      %p222 = pneg %p53
      %p223 = scmp.lt.s32.totalorder %s21, %s20
      %s224 = scalar_select %p223, %s21, %s20
      %p225 = scmp.lt.s32.totalorder %s19, 7
      %s226 = scalar_select %p225, %s19, 7
      %p227 = scmp.lt.s32.totalorder %s224, 0
      %s228 = scalar_select %p227, %s224, 0
      %s229 = sadd.s32 %s228, %s226
      %s230 = sadd.s32 %s229, 8
      %s231 = smul.addr %s230, 8
      %s232 = scalar_lea.vmem %s1, %s231
      %p233 = pneg %p88
      %p234 = pneg %p85
      %p235 = scmp.lt.s32.totalorder %s21, %s20
      %s236 = scalar_select %p235, %s21, %s20
      %p237 = scmp.lt.s32.totalorder %s19, 7
      %s238 = scalar_select %p237, %s19, 7
      %p239 = scmp.lt.s32.totalorder %s236, 0
      %s240 = scalar_select %p239, %s236, 0
      %s241 = sadd.s32 %s240, %s238
      %s242 = sadd.s32 %s241, 16
      %s243 = smul.addr %s242, 8
      %s244 = scalar_lea.vmem %s2, %s243
      %p245 = pneg %p120
      %p246 = pneg %p117
      %p247 = pneg %p148
      %p248 = pneg %p145
      %p249 = scmp.lt.s32.totalorder %s19, 7
      %s250 = scalar_select %p249, %s19, 7
      %p251 = scmp.lt.s32.totalorder %s20, 0
      %s252 = scalar_select %p251, %s20, 0
      %s253 = sadd.s32 %s252, %s250
      %s254 = smul.addr %s253, 8
      %s255 = scalar_lea.vmem %s3, %s254
      %p256 = scmp.lt.s32.totalorder %s19, 7
      %s257 = scalar_select %p256, %s19, 7
      %p258 = scmp.lt.s32.totalorder %s20, 0
      %s259 = scalar_select %p258, %s20, 0
      %s260 = sadd.s32 %s259, %s257
      %s261 = smul.addr %s260, 8
      %s262 = scalar_lea.vmem %s0, %s261
      %p263 = scmp.lt.s32.totalorder %s21, %s20
      %s264 = scalar_select %p263, %s21, %s20
      %p265 = scmp.lt.s32.totalorder %s19, 7
      %s266 = scalar_select %p265, %s19, 7
      %p267 = scmp.lt.s32.totalorder %s264, 0
      %s268 = scalar_select %p267, %s264, 0
      %s269 = sadd.s32 %s268, %s266
      %s270 = sadd.s32 %s269, 8
      %s271 = smul.addr %s270, 8
      %s272 = scalar_lea.vmem %s1, %s271
      %p273 = scmp.lt.s32.totalorder %s21, %s20
      %s274 = scalar_select %p273, %s21, %s20
      %p275 = scmp.lt.s32.totalorder %s21, %s20
      %s276 = scalar_select %p275, %s21, %s20
      %p277 = scmp.lt.s32.totalorder %s19, 7
      %s278 = scalar_select %p277, %s19, 7
      %p279 = scmp.lt.s32.totalorder %s276, 0
      %s280 = scalar_select %p279, %s276, 0
      %s281 = sadd.s32 %s280, %s278
      %s282 = sadd.s32 %s281, 16
      %s283 = smul.addr %s282, 8
      %s284 = scalar_lea.vmem %s2, %s283
      %p285 = scmp.lt.s32.totalorder %s21, %s20
      %s286 = scalar_select %p285, %s21, %s20
      %p287 = scmp.lt.s32.totalorder %s19, 7
      %s288 = scalar_select %p287, %s19, 7
      %p289 = scmp.lt.s32.totalorder %s20, 0
      %s290 = scalar_select %p289, %s20, 0
      %s291 = sadd.s32 %s290, %s288
      %s292 = smul.addr %s291, 8
      %s293 = scalar_lea.vmem %s3, %s292
      %p294 = scmp.eq.s32.totalorder %s21, 0
      // Predicated region
      $region33: #{causal_self_attention.4} parent=31 // pred_check
        %p295 = pneg %p294
      $region34: #{causal_self_attention.4} parent=31 // pred_check_branch
        %297 = sbr.rel (%p295) target = $region36
      $region35: #{causal_self_attention.4} parent=31 // pred_region
        %v298 = vld [vmem:[%s262] sm:$0xff]
        %v299 = vmul.f32 %v298, 0.35355338
        %vm300 = vcmask 64512
        %301 = vst.msk [vmem:[#allocation2] sm:$0xff] %vm300, %v299
        %vm302 = vcmask 7168
        %303 = vst.msk [vmem:[#allocation3] sm:$0xff] %vm302, -inf
        %304 = vst.msk [vmem:[#allocation4] sm:$0xff] %vm302, 0.0
        %305 = vst.msk [vmem:[#allocation5] sm:$0xff] %vm300, 0.0
      $region36: #{causal_self_attention.4} parent=31 // pred_fallthru
        _
      %p306 = scmp.lt.s32.totalorder %s21, %s20
      // Predicated region
      $region37: #{causal_self_attention.4} parent=31 // pred_check
        %p307 = pneg %p306
      $region38: #{causal_self_attention.4} parent=31 // pred_check_branch
        %309 = sbr.rel (%p307) target = $region40
      $region39: #{causal_self_attention.4} parent=31 // pred_region
        %v310 = vld [vmem:[%s272] sm:$0xff]
        %v311 = vld [vmem:[%s284] sm:$0xff]
        %v312 = vld [vmem:[#allocation2] sm:$0xff]
        %vm313 = vcmask 64512
        %v315 = vsel %vm313, %v312, 0
        %v318 = vsel %vm313, %v310, 0
        %320 = vmatprep.subr.mxu0 0.0
        %321 = vmatpush1.xpose.msra.mxu0 0.0
        %322 = vmatprep.subr.mxu0 0.0
        %323 = vmatpush1.xpose.msra.mxu0 0.0
        %324 = vmatprep.subr.mxu0 0.0
        %325 = vmatpush1.xpose.msra.mxu0 0.0
        %326 = vmatprep.subr.mxu0 0.0
        %327 = vmatpush1.xpose.msra.mxu0 0.0
        %328 = vmatprep.subr.mxu0 0.0
        %329 = vmatpush1.xpose.msra.mxu0 0.0
        %330 = vmatprep.subr.mxu0 0.0
        %331 = vmatpush1.xpose.msra.mxu0 0.0
        %332 = vmatprep.subr.mxu0 0.0
        %333 = vmatpush1.xpose.msra.mxu0 0.0
        %334 = vmatprep.subr.mxu0 0.0
        %335 = vmatpush1.xpose.msra.mxu0 0.0
        %336 = vmatprep.subr.mxu0 0.0
        %337 = vmatpush1.xpose.msra.mxu0 0.0
        %338 = vmatprep.subr.mxu0 0.0
        %339 = vmatpush1.xpose.msra.mxu0 0.0
        %340 = vmatprep.subr.mxu0 0.0
        %341 = vmatpush1.xpose.msra.mxu0 0.0
        %342 = vmatprep.subr.mxu0 0.0
        %343 = vmatpush1.xpose.msra.mxu0 0.0
        %344 = vmatprep.subr.mxu0 0.0
        %345 = vmatpush1.xpose.msra.mxu0 0.0
        %346 = vmatprep.subr.mxu0 0.0
        %347 = vmatpush1.xpose.msra.mxu0 0.0
        %348 = vmatprep.subr.mxu0 0.0
        %349 = vmatpush1.xpose.msra.mxu0 0.0
        %350 = vmatprep.subr.mxu0 0.0
        %351 = vmatpush1.xpose.msra.mxu0 %v318
        %352 = vmatprep.subr.mxu0 0.0
        %353 = vmatpush2.xpose.msra.mxu0 0.0
        %354 = vmatprep.subr.mxu0 0.0
        %355 = vmatpush2.xpose.msra.mxu0 0.0
        %356 = vmatprep.subr.mxu0 0.0
        %357 = vmatpush2.xpose.msra.mxu0 0.0
        %358 = vmatprep.subr.mxu0 0.0
        %359 = vmatpush2.xpose.msra.mxu0 0.0
        %360 = vmatprep.subr.mxu0 0.0
        %361 = vmatpush2.xpose.msra.mxu0 0.0
        %362 = vmatprep.subr.mxu0 0.0
        %363 = vmatpush2.xpose.msra.mxu0 0.0
        %364 = vmatprep.subr.mxu0 0.0
        %365 = vmatpush2.xpose.msra.mxu0 0.0
        %366 = vmatprep.subr.mxu0 0.0
        %367 = vmatpush2.xpose.msra.mxu0 0.0
        %368 = vmatprep.subr.mxu0 0.0
        %369 = vmatpush2.xpose.msra.mxu0 0.0
        %370 = vmatprep.subr.mxu0 0.0
        %371 = vmatpush2.xpose.msra.mxu0 0.0
        %372 = vmatprep.subr.mxu0 0.0
        %373 = vmatpush2.xpose.msra.mxu0 0.0
        %374 = vmatprep.subr.mxu0 0.0
        %375 = vmatpush2.xpose.msra.mxu0 0.0
        %376 = vmatprep.subr.mxu0 0.0
        %377 = vmatpush2.xpose.msra.mxu0 0.0
        %378 = vmatprep.subr.mxu0 0.0
        %379 = vmatpush2.xpose.msra.mxu0 0.0
        %380 = vmatprep.subr.mxu0 0.0
        %381 = vmatpush2.xpose.msra.mxu0 0.0
        %382 = vmatprep.subr.mxu0 0.0
        %383 = vmatpush2.xpose.msra.mxu0 0.0
        %384 = vmatprep.mubr.f32.mxu0 0.0
        %385 = vmatmul.mubr.f32.gmra.mxu0 %v315
        %v386 = vpop.f32.mrf.mxu0
        %v387 = vadd.f32 0.0, %v386
        %v388 = vpop.f32.mrf.mxu0
        %389 = vdwg.mxu0
        %v390 = vld [vmem:[#allocation3] sm:$0xff]
        %v391 = vsel %vm313, %v387, -inf
        %392 = vmax.xlane.f32.xlu0 %v391
        %v393 = vpop.xlane.xlu0 %392
        %v394 = vmax.f32 %v390, %v393
        %v395 = vsub.f32 %v390, %v394
        %v396 = vmul.f32 %v395, 1.442695
        %v397 = vpow.pop %v396
        %399 = vset.pattern.permute.xlu0 0
        %400 = vperm.xlu0 %399, %v394
        %v401 = vpop.permute.xlu0 %400
        %v403 = vsub.f32 %v387, %v401
        %v404 = vmul.f32 %v403, 1.442695
        %v405 = vpow.pop %v404
        %v406 = vld [vmem:[#allocation4] sm:$0xff]
        %v407 = vmul.f32 %v397, %v406
        %v408 = vsel %vm313, %v405, 0.0
        %409 = vadd.xlane.f32.xlu0 %v408
        %v410 = vpop.xlane.xlu0 %409
        %v411 = vadd.f32 %v407, %v410
        %vm412 = vcmask 7168
        %413 = vst.msk [vmem:[#allocation4] sm:$0xff] %vm412, %v411
        %v414 = vld [vmem:[#allocation5] sm:$0xff]
        %416 = vset.pattern.permute.xlu0 0
        %417 = vperm.xlu0 %416, %v397
        %v418 = vpop.permute.xlu0 %417
        %v420 = vmul.f32 %v418, %v414
        %v422 = vsel %vm313, %v405, 0
        %424 = vmatprep.subr.mxu0 0.0
        %425 = vmatpush1.msra.mxu0 0.0
        %426 = vmatprep.subr.mxu0 0.0
        %427 = vmatpush1.msra.mxu0 0.0
        %428 = vmatprep.subr.mxu0 0.0
        %429 = vmatpush1.msra.mxu0 0.0
        %430 = vmatprep.subr.mxu0 0.0
        %431 = vmatpush1.msra.mxu0 0.0
        %432 = vmatprep.subr.mxu0 0.0
        %433 = vmatpush1.msra.mxu0 0.0
        %434 = vmatprep.subr.mxu0 0.0
        %435 = vmatpush1.msra.mxu0 0.0
        %436 = vmatprep.subr.mxu0 0.0
        %437 = vmatpush1.msra.mxu0 0.0
        %438 = vmatprep.subr.mxu0 0.0
        %439 = vmatpush1.msra.mxu0 0.0
        %440 = vmatprep.subr.mxu0 0.0
        %441 = vmatpush1.msra.mxu0 0.0
        %442 = vmatprep.subr.mxu0 0.0
        %443 = vmatpush1.msra.mxu0 0.0
        %444 = vmatprep.subr.mxu0 0.0
        %445 = vmatpush1.msra.mxu0 0.0
        %446 = vmatprep.subr.mxu0 0.0
        %447 = vmatpush1.msra.mxu0 0.0
        %448 = vmatprep.subr.mxu0 0.0
        %449 = vmatpush1.msra.mxu0 0.0
        %450 = vmatprep.subr.mxu0 0.0
        %451 = vmatpush1.msra.mxu0 0.0
        %452 = vmatprep.subr.mxu0 0.0
        %453 = vmatpush1.msra.mxu0 0.0
        %454 = vmatprep.subr.mxu0 0.0
        %455 = vmatpush1.msra.mxu0 %v311
        %456 = vmatprep.subr.mxu0 0.0
        %457 = vmatpush2.msra.mxu0 0.0
        %458 = vmatprep.subr.mxu0 0.0
        %459 = vmatpush2.msra.mxu0 0.0
        %460 = vmatprep.subr.mxu0 0.0
        %461 = vmatpush2.msra.mxu0 0.0
        %462 = vmatprep.subr.mxu0 0.0
        %463 = vmatpush2.msra.mxu0 0.0
        %464 = vmatprep.subr.mxu0 0.0
        %465 = vmatpush2.msra.mxu0 0.0
        %466 = vmatprep.subr.mxu0 0.0
        %467 = vmatpush2.msra.mxu0 0.0
        %468 = vmatprep.subr.mxu0 0.0
        %469 = vmatpush2.msra.mxu0 0.0
        %470 = vmatprep.subr.mxu0 0.0
        %471 = vmatpush2.msra.mxu0 0.0
        %472 = vmatprep.subr.mxu0 0.0
        %473 = vmatpush2.msra.mxu0 0.0
        %474 = vmatprep.subr.mxu0 0.0
        %475 = vmatpush2.msra.mxu0 0.0
        %476 = vmatprep.subr.mxu0 0.0
        %477 = vmatpush2.msra.mxu0 0.0
        %478 = vmatprep.subr.mxu0 0.0
        %479 = vmatpush2.msra.mxu0 0.0
        %480 = vmatprep.subr.mxu0 0.0
        %481 = vmatpush2.msra.mxu0 0.0
        %482 = vmatprep.subr.mxu0 0.0
        %483 = vmatpush2.msra.mxu0 0.0
        %484 = vmatprep.subr.mxu0 0.0
        %485 = vmatpush2.msra.mxu0 0.0
        %486 = vmatprep.subr.mxu0 0.0
        %487 = vmatpush2.msra.mxu0 0.0
        %488 = vmatprep.mubr.f32.mxu0 0.0
        %489 = vmatmul.mubr.f32.gmra.mxu0 %v422
        %v490 = vpop.f32.mrf.mxu0
        %v491 = vadd.f32 0.0, %v490
        %v492 = vpop.f32.mrf.mxu0
        %493 = vdwg.mxu0
        %v494 = vadd.f32 %v420, %v491
        %495 = vst.msk [vmem:[#allocation5] sm:$0xff] %vm313, %v494
        %496 = vst.msk [vmem:[#allocation3] sm:$0xff] %vm412, %v394
      $region40: #{causal_self_attention.4} parent=31 // pred_fallthru
        _
      %p497 = scmp.eq.s32.totalorder %s21, %s20
      // Predicated region
      $region41: #{causal_self_attention.4} parent=31 // pred_check
        %p498 = pneg %p497
      $region42: #{causal_self_attention.4} parent=31 // pred_check_branch
        %500 = sbr.rel (%p498) target = $region44
      $region43: #{causal_self_attention.4} parent=31 // pred_region
        %v501 = vld [vmem:[%s272] sm:$0xff]
        %v502 = vld [vmem:[%s284] sm:$0xff]
        %v503 = vld [vmem:[#allocation2] sm:$0xff]
        %vm504 = vcmask 64512
        %v506 = vsel %vm504, %v503, 0
        %v509 = vsel %vm504, %v501, 0
        %511 = vmatprep.subr.mxu0 0.0
        %512 = vmatpush1.xpose.msra.mxu0 0.0
        %513 = vmatprep.subr.mxu0 0.0
        %514 = vmatpush1.xpose.msra.mxu0 0.0
        %515 = vmatprep.subr.mxu0 0.0
        %516 = vmatpush1.xpose.msra.mxu0 0.0
        %517 = vmatprep.subr.mxu0 0.0
        %518 = vmatpush1.xpose.msra.mxu0 0.0
        %519 = vmatprep.subr.mxu0 0.0
        %520 = vmatpush1.xpose.msra.mxu0 0.0
        %521 = vmatprep.subr.mxu0 0.0
        %522 = vmatpush1.xpose.msra.mxu0 0.0
        %523 = vmatprep.subr.mxu0 0.0
        %524 = vmatpush1.xpose.msra.mxu0 0.0
        %525 = vmatprep.subr.mxu0 0.0
        %526 = vmatpush1.xpose.msra.mxu0 0.0
        %527 = vmatprep.subr.mxu0 0.0
        %528 = vmatpush1.xpose.msra.mxu0 0.0
        %529 = vmatprep.subr.mxu0 0.0
        %530 = vmatpush1.xpose.msra.mxu0 0.0
        %531 = vmatprep.subr.mxu0 0.0
        %532 = vmatpush1.xpose.msra.mxu0 0.0
        %533 = vmatprep.subr.mxu0 0.0
        %534 = vmatpush1.xpose.msra.mxu0 0.0
        %535 = vmatprep.subr.mxu0 0.0
        %536 = vmatpush1.xpose.msra.mxu0 0.0
        %537 = vmatprep.subr.mxu0 0.0
        %538 = vmatpush1.xpose.msra.mxu0 0.0
        %539 = vmatprep.subr.mxu0 0.0
        %540 = vmatpush1.xpose.msra.mxu0 0.0
        %541 = vmatprep.subr.mxu0 0.0
        %542 = vmatpush1.xpose.msra.mxu0 %v509
        %543 = vmatprep.subr.mxu0 0.0
        %544 = vmatpush2.xpose.msra.mxu0 0.0
        %545 = vmatprep.subr.mxu0 0.0
        %546 = vmatpush2.xpose.msra.mxu0 0.0
        %547 = vmatprep.subr.mxu0 0.0
        %548 = vmatpush2.xpose.msra.mxu0 0.0
        %549 = vmatprep.subr.mxu0 0.0
        %550 = vmatpush2.xpose.msra.mxu0 0.0
        %551 = vmatprep.subr.mxu0 0.0
        %552 = vmatpush2.xpose.msra.mxu0 0.0
        %553 = vmatprep.subr.mxu0 0.0
        %554 = vmatpush2.xpose.msra.mxu0 0.0
        %555 = vmatprep.subr.mxu0 0.0
        %556 = vmatpush2.xpose.msra.mxu0 0.0
        %557 = vmatprep.subr.mxu0 0.0
        %558 = vmatpush2.xpose.msra.mxu0 0.0
        %559 = vmatprep.subr.mxu0 0.0
        %560 = vmatpush2.xpose.msra.mxu0 0.0
        %561 = vmatprep.subr.mxu0 0.0
        %562 = vmatpush2.xpose.msra.mxu0 0.0
        %563 = vmatprep.subr.mxu0 0.0
        %564 = vmatpush2.xpose.msra.mxu0 0.0
        %565 = vmatprep.subr.mxu0 0.0
        %566 = vmatpush2.xpose.msra.mxu0 0.0
        %567 = vmatprep.subr.mxu0 0.0
        %568 = vmatpush2.xpose.msra.mxu0 0.0
        %569 = vmatprep.subr.mxu0 0.0
        %570 = vmatpush2.xpose.msra.mxu0 0.0
        %571 = vmatprep.subr.mxu0 0.0
        %572 = vmatpush2.xpose.msra.mxu0 0.0
        %573 = vmatprep.subr.mxu0 0.0
        %574 = vmatpush2.xpose.msra.mxu0 0.0
        %575 = vmatprep.mubr.f32.mxu0 0.0
        %576 = vmatmul.mubr.f32.gmra.mxu0 %v506
        %v577 = vpop.f32.mrf.mxu0
        %v578 = vadd.f32 0.0, %v577
        %v579 = vpop.f32.mrf.mxu0
        %580 = vdwg.mxu0
        %v581 = vlaneseq
        %v582 = vshrl.u32 %v581, 7
        %v583 = vlaneseq
        %v584 = vand.u32 %v583, 127
        %vm585 = vcmp.le.s32.totalorder %v584, %v582
        %v586 = vsel %vm585, %v578, -1e+30
        %v587 = vld [vmem:[#allocation3] sm:$0xff]
        %v588 = vsel %vm504, %v586, -inf
        %589 = vmax.xlane.f32.xlu0 %v588
        %v590 = vpop.xlane.xlu0 %589
        %v591 = vmax.f32 %v587, %v590
        %v592 = vsub.f32 %v587, %v591
        %v593 = vmul.f32 %v592, 1.442695
        %v594 = vpow.pop %v593
        %596 = vset.pattern.permute.xlu0 0
        %597 = vperm.xlu0 %596, %v591
        %v598 = vpop.permute.xlu0 %597
        %v600 = vsub.f32 %v586, %v598
        %v601 = vmul.f32 %v600, 1.442695
        %v602 = vpow.pop %v601
        %v603 = vld [vmem:[#allocation4] sm:$0xff]
        %v604 = vmul.f32 %v594, %v603
        %v605 = vsel %vm504, %v602, 0.0
        %606 = vadd.xlane.f32.xlu0 %v605
        %v607 = vpop.xlane.xlu0 %606
        %v608 = vadd.f32 %v604, %v607
        %vm609 = vcmask 7168
        %610 = vst.msk [vmem:[#allocation4] sm:$0xff] %vm609, %v608
        %v611 = vld [vmem:[#allocation5] sm:$0xff]
        %613 = vset.pattern.permute.xlu0 0
        %614 = vperm.xlu0 %613, %v594
        %v615 = vpop.permute.xlu0 %614
        %v617 = vmul.f32 %v615, %v611
        %v619 = vsel %vm504, %v602, 0
        %621 = vmatprep.subr.mxu0 0.0
        %622 = vmatpush1.msra.mxu0 0.0
        %623 = vmatprep.subr.mxu0 0.0
        %624 = vmatpush1.msra.mxu0 0.0
        %625 = vmatprep.subr.mxu0 0.0
        %626 = vmatpush1.msra.mxu0 0.0
        %627 = vmatprep.subr.mxu0 0.0
        %628 = vmatpush1.msra.mxu0 0.0
        %629 = vmatprep.subr.mxu0 0.0
        %630 = vmatpush1.msra.mxu0 0.0
        %631 = vmatprep.subr.mxu0 0.0
        %632 = vmatpush1.msra.mxu0 0.0
        %633 = vmatprep.subr.mxu0 0.0
        %634 = vmatpush1.msra.mxu0 0.0
        %635 = vmatprep.subr.mxu0 0.0
        %636 = vmatpush1.msra.mxu0 0.0
        %637 = vmatprep.subr.mxu0 0.0
        %638 = vmatpush1.msra.mxu0 0.0
        %639 = vmatprep.subr.mxu0 0.0
        %640 = vmatpush1.msra.mxu0 0.0
        %641 = vmatprep.subr.mxu0 0.0
        %642 = vmatpush1.msra.mxu0 0.0
        %643 = vmatprep.subr.mxu0 0.0
        %644 = vmatpush1.msra.mxu0 0.0
        %645 = vmatprep.subr.mxu0 0.0
        %646 = vmatpush1.msra.mxu0 0.0
        %647 = vmatprep.subr.mxu0 0.0
        %648 = vmatpush1.msra.mxu0 0.0
        %649 = vmatprep.subr.mxu0 0.0
        %650 = vmatpush1.msra.mxu0 0.0
        %651 = vmatprep.subr.mxu0 0.0
        %652 = vmatpush1.msra.mxu0 %v502
        %653 = vmatprep.subr.mxu0 0.0
        %654 = vmatpush2.msra.mxu0 0.0
        %655 = vmatprep.subr.mxu0 0.0
        %656 = vmatpush2.msra.mxu0 0.0
        %657 = vmatprep.subr.mxu0 0.0
        %658 = vmatpush2.msra.mxu0 0.0
        %659 = vmatprep.subr.mxu0 0.0
        %660 = vmatpush2.msra.mxu0 0.0
        %661 = vmatprep.subr.mxu0 0.0
        %662 = vmatpush2.msra.mxu0 0.0
        %663 = vmatprep.subr.mxu0 0.0
        %664 = vmatpush2.msra.mxu0 0.0
        %665 = vmatprep.subr.mxu0 0.0
        %666 = vmatpush2.msra.mxu0 0.0
        %667 = vmatprep.subr.mxu0 0.0
        %668 = vmatpush2.msra.mxu0 0.0
        %669 = vmatprep.subr.mxu0 0.0
        %670 = vmatpush2.msra.mxu0 0.0
        %671 = vmatprep.subr.mxu0 0.0
        %672 = vmatpush2.msra.mxu0 0.0
        %673 = vmatprep.subr.mxu0 0.0
        %674 = vmatpush2.msra.mxu0 0.0
        %675 = vmatprep.subr.mxu0 0.0
        %676 = vmatpush2.msra.mxu0 0.0
        %677 = vmatprep.subr.mxu0 0.0
        %678 = vmatpush2.msra.mxu0 0.0
        %679 = vmatprep.subr.mxu0 0.0
        %680 = vmatpush2.msra.mxu0 0.0
        %681 = vmatprep.subr.mxu0 0.0
        %682 = vmatpush2.msra.mxu0 0.0
        %683 = vmatprep.subr.mxu0 0.0
        %684 = vmatpush2.msra.mxu0 0.0
        %685 = vmatprep.mubr.f32.mxu0 0.0
        %686 = vmatmul.mubr.f32.gmra.mxu0 %v619
        %v687 = vpop.f32.mrf.mxu0
        %v688 = vadd.f32 0.0, %v687
        %v689 = vpop.f32.mrf.mxu0
        %690 = vdwg.mxu0
        %v691 = vadd.f32 %v617, %v688
        %692 = vst.msk [vmem:[#allocation5] sm:$0xff] %vm504, %v691
        %693 = vst.msk [vmem:[#allocation3] sm:$0xff] %vm609, %v591
        %v694 = vld [vmem:[#allocation4] sm:$0xff]
        %v695 = vrcp.pop %v694
        %v696 = vld [vmem:[#allocation5] sm:$0xff]
        %698 = vset.pattern.permute.xlu0 0
        %699 = vperm.xlu0 %698, %v695
        %v700 = vpop.permute.xlu0 %699
        %v702 = vmul.f32 %v696, %v700
        %703 = vst.msk [vmem:[%s293] sm:$0xff] %vm504, %v702
      $region44: #{causal_self_attention.4} parent=31 // pred_fallthru
        _
      %p704 = scmp.lt.s32.totalorder %s19, 7
      %s705 = scalar_select %p704, %s19, 7
      %p706 = scmp.lt.s32.totalorder %s20, 0
      %s707 = scalar_select %p706, %s20, 0
      %s708 = sadd.s32 %s707, %s705
      %s709 = smul.addr %s708, 8
      %s710 = scalar_lea.vmem %s3, %s709
      // Predicated region
      $region45: #{causal_self_attention.4} parent=31 // pred_check
        %p711 = pneg %p145
      $region46: #{causal_self_attention.4} parent=31 // pred_check_branch
        %713 = sbr.rel (%p711) target = $region48
      $region47: #{causal_self_attention.4} parent=31 // pred_region
        _
      $region48: #{causal_self_attention.4} parent=31 // pred_fallthru
        _
    $region32: #{causal_self_attention.4} parent=5 // pred_fallthru
      _
    %p714 = scmp.le.s32.totalorder 2, %s9
    // Predicated region
    $region49: #{causal_self_attention.4} parent=5 // pred_check
      %p715 = pneg %p714
    $region50: #{causal_self_attention.4} parent=5 // pred_check_branch
      %717 = sbr.rel (%p715) target = $region52
    $region51: #{causal_self_attention.4} parent=5 // pred_region
      %s718 = ssub.s32 %s9, 2
      // Predicated region
      $region53: #{causal_self_attention.4} parent=51 // pred_check
        %p719 = pneg %p151
      $region54: #{causal_self_attention.4} parent=51 // pred_check_branch
        %721 = sbr.rel (%p719) target = $region56
      $region55: #{causal_self_attention.4} parent=51 // pred_region
        %p722 = scmp.lt.s32.totalorder %s22, 7
        %s723 = scalar_select %p722, %s22, 7
        %p724 = scmp.lt.s32.totalorder %s23, 0
        %s725 = scalar_select %p724, %s23, 0
        %s726 = sadd.s32 %s725, %s723
        %s727 = smul.addr %s726, 8
        %s728 = scalar_lea.vmem %s3, %s727
      $region56: #{causal_self_attention.4} parent=51 // pred_fallthru
        _
    $region52: #{causal_self_attention.4} parent=5 // pred_fallthru
      _
  $region6: #{causal_self_attention.4} parent=0 // loop_footer
    %s13 = sadd.s32 1, %s9
  $region7: #{causal_self_attention.4} parent=0 // loop_footer_branch
    %8 = sbr.rel target = $region3
  $region8: #{causal_self_attention.4} parent=0 // loop_exit
    _

// kernel: causal_self_attention.5
$region0: #{causal_self_attention.5}
  #allocation0 [shape = 'u32[]', space=smem, size = 0x4, offset = 0x4, fixed_abs, tag = 'smem constant byte address 0x4 - core index']
  #allocation1 [shape = 'u32[144,128]{1,0:T(1,128)}', space=vmem, size = 0x12000, scoped, tag = 'internal scratch']
  #allocation2 [shape = 'f32[8,32]{1,0:T(8,128)}', space=vmem, size = 0x1000, scoped, tag = 'scratch operand']
  %s0 = inlined_call_operand.vmem [shape: f32[2,4,8,8], index: 0, kind: input, shape index: {}]
  %s1 = inlined_call_operand.vmem [shape: f32[4,8,32], index: 1, kind: input, shape index: {}]
  %s2 = inlined_call_operand.vmem [shape: f32[1,32], index: 2, kind: input, shape index: {}]
  %s3 = inlined_call_operand.hbm [shape: f32[2,8,32], index: 3, kind: output, shape index: {}]
  %s4 = sld [smem:[#allocation0]]
  $region53: #{causal_self_attention.5} parent=0
    _
  %s6 = ssub.s32 1, %s4
  %s7 = scalar_select 0, %s6, %s4
  $region1: #{causal_self_attention.5} parent=0
    #allocation3 [shape = 'u8[8192]{0}', space=vmem, size = 0x2000, scoped, tag = 'output window, operand 0']
    #allocation4 [shape = 's32[2]{0}', space=sflag, size = 0x8, scoped, tag = 'scoped memory for causal_self_attention.5']
    %8 = vsyncpa [#allocation4], 0
    %s9 = scalar_lea.sflag [#allocation4], 1
    %10 = vsyncpa %s9, 0
    loop: start=0, step=1, limit=10
    $region2: #{causal_self_attention.5} parent=1 // loop_pre_header
      _
    $region3: #{causal_self_attention.5} parent=1 // loop_header
      %s12 = sphi 0, %s16
      %p13 = scmp.ge.s32.totalorder %s12, 10
      %s19 = sphi 0, %s45
      %s20 = sphi 0, %s41
      %s21 = sphi 0, %s37
      %s22 = sphi 0, %s33
      %s23 = sphi 0, %s19
      %s24 = sphi 0, %s20
      %s25 = sphi 0, %s21
      %s26 = sphi 0, %s22
      %s27 = sphi 0, %s23
      %s28 = sphi 0, %s24
      %s29 = sphi 0, %s25
      %s30 = sphi 0, %s26
      %s52 = sphi 0, %s54
      %s55 = sphi 0, %s52
      %s56 = sphi 0, %s55
      %s72 = sphi 0, %s56
      %s80 = sphi 0, %s82
      %s83 = sphi 0, %s80
      %s84 = sphi 0, %s83
      %s100 = sphi 0, %s84
      %s106 = sphi 0, %s108
      %s109 = sphi 0, %s106
      %s110 = sphi 0, %s109
      %s126 = sphi 0, %s110
      %s136 = sphi 0, %s138
      %s139 = sphi 0, %s136
      %s140 = sphi 0, %s139
      %s156 = sphi 0, %s140
    $region4: #{causal_self_attention.5} parent=1 // loop_header_branch
      %15 = sbr.rel (%p13) target = $region8
    $region5: #{causal_self_attention.5} parent=1 // loop_body
      %s17 = ssub.s32 %s12, 1
      %s18 = ssub.s32 %s12, 2
      %s31 = sadd.s32 1, %s22
      %p32 = scmp.ge.s32.totalorder %s31, 4
      %s33 = scalar_select %p32, 0, %s31
      %s34 = sadd.s32 1, %s21
      %s35 = scalar_select %p32, %s34, %s21
      %p36 = scmp.ge.s32.totalorder %s35, 1
      %s37 = scalar_select %p36, 0, %s35
      %s38 = sadd.s32 1, %s20
      %s39 = scalar_select %p36, %s38, %s20
      %p40 = scmp.ge.s32.totalorder %s39, 1
      %s41 = scalar_select %p40, 0, %s39
      %s42 = sadd.s32 1, %s19
      %s43 = scalar_select %p40, %s42, %s19
      %p44 = scmp.ge.s32.totalorder %s43, 2
      %s45 = scalar_select %p44, 0, %s43
      %s46 = ssub.s32 %s19, %s45
      %s47 = ssub.s32 %s22, %s33
      %s48 = sor.u32 %s46, %s47
      %s49 = ssub.s32 %s20, %s41
      %s50 = sor.u32 %s48, %s49
      %p51 = scmp.eq.s32.totalorder %s50, 0
      %s53 = sadd.s32 %s52, 1
      %s54 = scalar_select %p51, %s52, %s53
      %p57 = pneg %p51
      %p58 = scmp.eq.s32.totalorder %s12, 7
      %p59 = por %p57, %p58
      %p60 = scmp.ne.s32.totalorder %s52, %s55
      %p61 = scmp.eq.s32.totalorder %s12, 0
      %p62 = por %p60, %p61
      %p63 = scmp.ne.s32.totalorder %s52, %s55
      %p64 = scmp.eq.s32.totalorder %s17, 7
      %p65 = por %p63, %p64
      %p66 = scmp.ne.s32.totalorder %s55, %s56
      %p67 = scmp.eq.s32.totalorder %s17, 0
      %p68 = por %p66, %p67
      %p69 = scmp.ne.s32.totalorder %s55, %s56
      %p70 = scmp.eq.s32.totalorder %s18, 7
      %p71 = por %p69, %p70
      %p73 = scmp.ne.s32.totalorder %s56, %s72
      %p74 = scmp.eq.s32.totalorder %s18, 0
      %p75 = por %p73, %p74
      %s76 = ssub.s32 %s22, %s33
      %s77 = ssub.s32 %s21, %s37
      %s78 = sor.u32 %s76, %s77
      %p79 = scmp.eq.s32.totalorder %s78, 0
      %s81 = sadd.s32 %s80, 1
      %s82 = scalar_select %p79, %s80, %s81
      %p85 = pneg %p79
      %p86 = scmp.eq.s32.totalorder %s12, 7
      %p87 = por %p85, %p86
      %p88 = scmp.ne.s32.totalorder %s80, %s83
      %p89 = scmp.eq.s32.totalorder %s12, 0
      %p90 = por %p88, %p89
      %p91 = scmp.ne.s32.totalorder %s80, %s83
      %p92 = scmp.eq.s32.totalorder %s17, 7
      %p93 = por %p91, %p92
      %p94 = scmp.ne.s32.totalorder %s83, %s84
      %p95 = scmp.eq.s32.totalorder %s17, 0
      %p96 = por %p94, %p95
      %p97 = scmp.ne.s32.totalorder %s83, %s84
      %p98 = scmp.eq.s32.totalorder %s18, 7
      %p99 = por %p97, %p98
      %p101 = scmp.ne.s32.totalorder %s84, %s100
      %p102 = scmp.eq.s32.totalorder %s18, 0
      %p103 = por %p101, %p102
      %s104 = ssub.s32 %s21, %s37
      %p105 = scmp.eq.s32.totalorder %s104, 0
      %s107 = sadd.s32 %s106, 1
      %s108 = scalar_select %p105, %s106, %s107
      %p111 = pneg %p105
      %p112 = scmp.eq.s32.totalorder %s12, 7
      %p113 = por %p111, %p112
      %p114 = scmp.ne.s32.totalorder %s106, %s109
      %p115 = scmp.eq.s32.totalorder %s12, 0
      %p116 = por %p114, %p115
      %p117 = scmp.ne.s32.totalorder %s106, %s109
      %p118 = scmp.eq.s32.totalorder %s17, 7
      %p119 = por %p117, %p118
      %p120 = scmp.ne.s32.totalorder %s109, %s110
      %p121 = scmp.eq.s32.totalorder %s17, 0
      %p122 = por %p120, %p121
      %p123 = scmp.ne.s32.totalorder %s109, %s110
      %p124 = scmp.eq.s32.totalorder %s18, 7
      %p125 = por %p123, %p124
      %p127 = scmp.ne.s32.totalorder %s110, %s126
      %p128 = scmp.eq.s32.totalorder %s18, 0
      %p129 = por %p127, %p128
      %s130 = ssub.s32 %s19, %s45
      %s131 = ssub.s32 %s20, %s41
      %s132 = sor.u32 %s130, %s131
      %s133 = ssub.s32 %s21, %s37
      %s134 = sor.u32 %s132, %s133
      %p135 = scmp.eq.s32.totalorder %s134, 0
      %s137 = sadd.s32 %s136, 1
      %s138 = scalar_select %p135, %s136, %s137
      %p141 = pneg %p135
      %p142 = scmp.eq.s32.totalorder %s12, 7
      %p143 = por %p141, %p142
      %p144 = scmp.ne.s32.totalorder %s136, %s139
      %p145 = scmp.eq.s32.totalorder %s12, 0
      %p146 = por %p144, %p145
      %p147 = scmp.ne.s32.totalorder %s136, %s139
      %p148 = scmp.eq.s32.totalorder %s17, 7
      %p149 = por %p147, %p148
      %p150 = scmp.ne.s32.totalorder %s139, %s140
      %p151 = scmp.eq.s32.totalorder %s17, 0
      %p152 = por %p150, %p151
      %p153 = scmp.ne.s32.totalorder %s139, %s140
      %p154 = scmp.eq.s32.totalorder %s18, 7
      %p155 = por %p153, %p154
      %p157 = scmp.ne.s32.totalorder %s140, %s156
      %p158 = scmp.eq.s32.totalorder %s18, 0
      %p159 = por %p157, %p158
      %p160 = scmp.le.s32.totalorder 1, %s12
      %p161 = scmp.lt.s32.totalorder %s12, 9
      %p162 = pnand %p160, %p161
      %p163 = pneg %p162
      // Predicated region
      $region9: #{causal_self_attention.5} parent=5 // pred_check
        _
      $region10: #{causal_self_attention.5} parent=5 // pred_check_branch
        %165 = sbr.rel (%p162) target = $region12
      $region11: #{causal_self_attention.5} parent=5 // pred_region
        %s166 = ssub.s32 %s12, 1
        // Predicated region
        $region13: #{causal_self_attention.5} parent=11 // pred_check
          %p167 = pneg %p122
        $region14: #{causal_self_attention.5} parent=11 // pred_check_branch
          %169 = sbr.rel (%p167) target = $region16
        $region15: #{causal_self_attention.5} parent=11 // pred_region
          %p170 = scmp.lt.s32.totalorder %s25, 0
          %s171 = scalar_select %p170, %s25, 0
          %s172 = scalar_lea.vmem %s2, %s171
        $region16: #{causal_self_attention.5} parent=11 // pred_fallthru
          _
      $region12: #{causal_self_attention.5} parent=5 // pred_fallthru
        _
      %p173 = scmp.lt.s32.totalorder %s12, 8
      // Predicated region
      $region17: #{causal_self_attention.5} parent=5 // pred_check
        %p174 = pneg %p173
      $region18: #{causal_self_attention.5} parent=5 // pred_check_branch
        %176 = sbr.rel (%p174) target = $region20
      $region19: #{causal_self_attention.5} parent=5 // pred_region
        // Predicated region
        $region21: #{causal_self_attention.5} parent=19 // pred_check
          %p177 = pneg %p62
        $region22: #{causal_self_attention.5} parent=19 // pred_check_branch
          %179 = sbr.rel (%p177) target = $region24
        $region23: #{causal_self_attention.5} parent=19 // pred_region
          %p180 = scmp.lt.s32.totalorder %s19, 1
          %s181 = scalar_select %p180, %s19, 1
          %p182 = scmp.lt.s32.totalorder %s22, 3
          %s183 = scalar_select %p182, %s22, 3
          %p184 = scmp.lt.s32.totalorder %s20, 0
          %s185 = scalar_select %p184, %s20, 0
          %s186 = sadd.s32 %s185, %s183
          %s187 = smul.addr %s181, 4
          %s188 = sadd.s32 %s186, %s187
          %s189 = smul.addr %s188, 8
          %s190 = scalar_lea.vmem %s0, %s189
        $region24: #{causal_self_attention.5} parent=19 // pred_fallthru
          _
        // Predicated region
        $region25: #{causal_self_attention.5} parent=19 // pred_check
          %p191 = pneg %p90
        $region26: #{causal_self_attention.5} parent=19 // pred_check_branch
          %193 = sbr.rel (%p191) target = $region28
        $region27: #{causal_self_attention.5} parent=19 // pred_region
          %p194 = scmp.lt.s32.totalorder %s22, 3
          %s195 = scalar_select %p194, %s22, 3
          %p196 = scmp.lt.s32.totalorder %s21, 0
          %s197 = scalar_select %p196, %s21, 0
          %s198 = sadd.s32 %s197, %s195
          %s199 = smul.addr %s198, 8
          %s200 = scalar_lea.vmem %s1, %s199
        $region28: #{causal_self_attention.5} parent=19 // pred_fallthru
          _
      $region20: #{causal_self_attention.5} parent=5 // pred_fallthru
        _
      %p201 = scmp.le.s32.totalorder 1, %s12
      %p202 = scmp.lt.s32.totalorder %s12, 9
      %p203 = pnand %p201, %p202
      %p204 = pneg %p203
      // Predicated region
      $region29: #{causal_self_attention.5} parent=5 // pred_check
        _
      $region30: #{causal_self_attention.5} parent=5 // pred_check_branch
        %206 = sbr.rel (%p203) target = $region32
      $region31: #{causal_self_attention.5} parent=5 // pred_region
        %s207 = ssub.s32 %s12, 1
        %p208 = scmp.lt.s32.totalorder %s23, 1
        %s209 = scalar_select %p208, %s23, 1
        %p210 = scmp.lt.s32.totalorder %s26, 3
        %s211 = scalar_select %p210, %s26, 3
        %p212 = scmp.lt.s32.totalorder %s24, 0
        %s213 = scalar_select %p212, %s24, 0
        %s214 = sadd.s32 %s213, %s211
        %s215 = smul.addr %s209, 4
        %s216 = sadd.s32 %s214, %s215
        %s217 = smul.addr %s216, 8
        %s218 = scalar_lea.vmem %s0, %s217
        %p219 = pneg %p68
        %p220 = pneg %p65
        %p221 = scmp.lt.s32.totalorder %s26, 3
        %s222 = scalar_select %p221, %s26, 3
        %p223 = scmp.lt.s32.totalorder %s25, 0
        %s224 = scalar_select %p223, %s25, 0
        %s225 = sadd.s32 %s224, %s222
        %s226 = smul.addr %s225, 8
        %s227 = scalar_lea.vmem %s1, %s226
        %p228 = pneg %p96
        %p229 = pneg %p93
        %p230 = scmp.lt.s32.totalorder %s25, 0
        %s231 = scalar_select %p230, %s25, 0
        %s232 = scalar_lea.vmem %s2, %s231
        %p233 = pneg %p122
        %p234 = pneg %p119
        %p235 = pneg %p152
        %p236 = pneg %p149
        %s237 = sand.u32 %s139, 1
        %s238 = scalar_lea.sflag [#allocation4], %s237
        %s239 = sand.u32 %s139, 1
        %s240 = smul.addr %s239, 8
        %s241 = scalar_lea.vmem [#allocation3], %s240
        %p242 = scmp.lt.s32.totalorder %s23, 1
        %s243 = scalar_select %p242, %s23, 1
        %p244 = scmp.lt.s32.totalorder %s26, 3
        %s245 = scalar_select %p244, %s26, 3
        %p246 = scmp.lt.s32.totalorder %s24, 0
        %s247 = scalar_select %p246, %s24, 0
        %s248 = sadd.s32 %s247, %s245
        %s249 = smul.addr %s243, 4
        %s250 = sadd.s32 %s248, %s249
        %s251 = smul.addr %s250, 8
        %s252 = scalar_lea.vmem %s0, %s251
        %p253 = scmp.lt.s32.totalorder %s26, 3
        %s254 = scalar_select %p253, %s26, 3
        %p255 = scmp.lt.s32.totalorder %s25, 0
        %s256 = scalar_select %p255, %s25, 0
        %s257 = sadd.s32 %s256, %s254
        %s258 = smul.addr %s257, 8
        %s259 = scalar_lea.vmem %s1, %s258
        %p260 = scmp.lt.s32.totalorder %s25, 0
        %s261 = scalar_select %p260, %s25, 0
        %s262 = scalar_lea.vmem %s2, %s261
        %p263 = scmp.eq.s32.totalorder %s26, 0
        // Predicated region
        $region33: #{causal_self_attention.5} parent=31 // pred_check
          %p264 = pneg %p263
        $region34: #{causal_self_attention.5} parent=31 // pred_check_branch
          %266 = sbr.rel (%p264) target = $region36
        $region35: #{causal_self_attention.5} parent=31 // pred_region
          %vm267 = vcmask 261120
          %268 = vst.msk [vmem:[#allocation2] sm:$0xff] %vm267, 0.0
        $region36: #{causal_self_attention.5} parent=31 // pred_fallthru
          _
        %v269 = vld [vmem:[#allocation2] sm:$0xff]
        %v270 = vld [vmem:[%s252] sm:$0xff]
        %v271 = vld [vmem:[%s259] sm:$0xff]
        %vm272 = vcmask 64512
        %v274 = vsel %vm272, %v270, 0
        %276 = vmatprep.subr.mxu0 0.0
        %277 = vmatpush1.msra.mxu0 0.0
        %278 = vmatprep.subr.mxu0 0.0
        %279 = vmatpush1.msra.mxu0 0.0
        %280 = vmatprep.subr.mxu0 0.0
        %281 = vmatpush1.msra.mxu0 0.0
        %282 = vmatprep.subr.mxu0 0.0
        %283 = vmatpush1.msra.mxu0 0.0
        %284 = vmatprep.subr.mxu0 0.0
        %285 = vmatpush1.msra.mxu0 0.0
        %286 = vmatprep.subr.mxu0 0.0
        %287 = vmatpush1.msra.mxu0 0.0
        %288 = vmatprep.subr.mxu0 0.0
        %289 = vmatpush1.msra.mxu0 0.0
        %290 = vmatprep.subr.mxu0 0.0
        %291 = vmatpush1.msra.mxu0 0.0
        %292 = vmatprep.subr.mxu0 0.0
        %293 = vmatpush1.msra.mxu0 0.0
        %294 = vmatprep.subr.mxu0 0.0
        %295 = vmatpush1.msra.mxu0 0.0
        %296 = vmatprep.subr.mxu0 0.0
        %297 = vmatpush1.msra.mxu0 0.0
        %298 = vmatprep.subr.mxu0 0.0
        %299 = vmatpush1.msra.mxu0 0.0
        %300 = vmatprep.subr.mxu0 0.0
        %301 = vmatpush1.msra.mxu0 0.0
        %302 = vmatprep.subr.mxu0 0.0
        %303 = vmatpush1.msra.mxu0 0.0
        %304 = vmatprep.subr.mxu0 0.0
        %305 = vmatpush1.msra.mxu0 0.0
        %306 = vmatprep.subr.mxu0 0.0
        %307 = vmatpush1.msra.mxu0 %v271
        %308 = vmatprep.subr.mxu0 0.0
        %309 = vmatpush2.msra.mxu0 0.0
        %310 = vmatprep.subr.mxu0 0.0
        %311 = vmatpush2.msra.mxu0 0.0
        %312 = vmatprep.subr.mxu0 0.0
        %313 = vmatpush2.msra.mxu0 0.0
        %314 = vmatprep.subr.mxu0 0.0
        %315 = vmatpush2.msra.mxu0 0.0
        %316 = vmatprep.subr.mxu0 0.0
        %317 = vmatpush2.msra.mxu0 0.0
        %318 = vmatprep.subr.mxu0 0.0
        %319 = vmatpush2.msra.mxu0 0.0
        %320 = vmatprep.subr.mxu0 0.0
        %321 = vmatpush2.msra.mxu0 0.0
        %322 = vmatprep.subr.mxu0 0.0
        %323 = vmatpush2.msra.mxu0 0.0
        %324 = vmatprep.subr.mxu0 0.0
        %325 = vmatpush2.msra.mxu0 0.0
        %326 = vmatprep.subr.mxu0 0.0
        %327 = vmatpush2.msra.mxu0 0.0
        %328 = vmatprep.subr.mxu0 0.0
        %329 = vmatpush2.msra.mxu0 0.0
        %330 = vmatprep.subr.mxu0 0.0
        %331 = vmatpush2.msra.mxu0 0.0
        %332 = vmatprep.subr.mxu0 0.0
        %333 = vmatpush2.msra.mxu0 0.0
        %334 = vmatprep.subr.mxu0 0.0
        %335 = vmatpush2.msra.mxu0 0.0
        %336 = vmatprep.subr.mxu0 0.0
        %337 = vmatpush2.msra.mxu0 0.0
        %338 = vmatprep.subr.mxu0 0.0
        %339 = vmatpush2.msra.mxu0 0.0
        %340 = vmatprep.mubr.f32.mxu0 0.0
        %341 = vmatmul.mubr.f32.gmra.mxu0 %v274
        %v342 = vpop.f32.mrf.mxu0
        %v343 = vadd.f32 0.0, %v342
        %v344 = vpop.f32.mrf.mxu0
        %345 = vdwg.mxu0
        %v346 = vadd.f32 %v269, %v343
        %vm347 = vcmask 261120
        %348 = vst.msk [vmem:[#allocation2] sm:$0xff] %vm347, %v346
        %p349 = scmp.eq.s32.totalorder %s26, 3
        // Predicated region
        $region37: #{causal_self_attention.5} parent=31 // pred_check
          %p350 = pneg %p349
        $region38: #{causal_self_attention.5} parent=31 // pred_check_branch
          %352 = sbr.rel (%p350) target = $region40
        $region39: #{causal_self_attention.5} parent=31 // pred_region
          %v353 = vld [vmem:[#allocation2] sm:$0xff]
          %v354 = vld [vmem:[%s262] sm:$0x1]
          %v356 = vlaneseq
          %v357 = vshrl.u32 %v356, 7
          %v358 = vsub.s32 0, %v357
          %v359 = vrot.slane %v354, %v358
          %v361 = vadd.f32 %v353, %v359
          %362 = vst.msk [vmem:[%s241] sm:$0xff] %vm347, %v361
        $region40: #{causal_self_attention.5} parent=31 // pred_fallthru
          _
        %s363 = sand.u32 %s139, 1
        %s364 = scalar_lea.sflag [#allocation4], %s363
        %s365 = sand.u32 %s139, 1
        %s366 = smul.addr %s365, 8
        %s367 = scalar_lea.vmem [#allocation3], %s366
        // Predicated region
        $region41: #{causal_self_attention.5} parent=31 // pred_check
          %p368 = pneg %p149
        $region42: #{causal_self_attention.5} parent=31 // pred_check_branch
          %370 = sbr.rel (%p368) target = $region44
        $region43: #{causal_self_attention.5} parent=31 // pred_region
          %s372 = ssub.s32 128, 128
          %373 = vsyncadd %s364, %s372
          %s374 = sadd.s32 %s25, %s24
          %s375 = sadd.s32 %s374, %s23
          %s376 = smul.addr %s375, 128
          %s377 = scalar_lea.hbm %s3, %s376
          %s379 = sshll.u32 %s367, 4
          %s380 = int_to_ptr.vmem [resolvable:$true] %s379
          %382 = dma.vmem_to_hbm [thread:$0]  %s380, 128, %s377, %s364
        $region44: #{causal_self_attention.5} parent=31 // pred_fallthru
          _
      $region32: #{causal_self_attention.5} parent=5 // pred_fallthru
        _
      %p383 = scmp.le.s32.totalorder 2, %s12
      // Predicated region
      $region45: #{causal_self_attention.5} parent=5 // pred_check
        %p384 = pneg %p383
      $region46: #{causal_self_attention.5} parent=5 // pred_check_branch
        %386 = sbr.rel (%p384) target = $region48
      $region47: #{causal_self_attention.5} parent=5 // pred_region
        %s387 = ssub.s32 %s12, 2
        // Predicated region
        $region49: #{causal_self_attention.5} parent=47 // pred_check
          %p388 = pneg %p155
        $region50: #{causal_self_attention.5} parent=47 // pred_check_branch
          %390 = sbr.rel (%p388) target = $region52
        $region51: #{causal_self_attention.5} parent=47 // pred_region
          %s391 = sand.u32 %s140, 1
          %s392 = scalar_lea.sflag [#allocation4], %s391
          %s393 = sand.u32 %s140, 1
          %s394 = smul.addr %s393, 8
          %s395 = scalar_lea.vmem [#allocation3], %s394
          %396 = dma.done %s392, 128
        $region52: #{causal_self_attention.5} parent=47 // pred_fallthru
          _
      $region48: #{causal_self_attention.5} parent=5 // pred_fallthru
        _
    $region6: #{causal_self_attention.5} parent=1 // loop_footer
      %s16 = sadd.s32 1, %s12
    $region7: #{causal_self_attention.5} parent=1 // loop_footer_branch
      %11 = sbr.rel target = $region3
    $region8: #{causal_self_attention.5} parent=1 // loop_exit
      _
    %397 = vsyncpa [#allocation4], 1
    %s398 = scalar_lea.sflag [#allocation4], 1
    %399 = vsyncpa %s398, 1

</llo_original>
